<compile_context>
chip_gen: v7x
topology: tpu7x:2x2x1
jax: 0.10.0
libtpu: 0.0.40
codegen_flags: <defaults>
</compile_context>

<pallas_src>
import jax
import jax.numpy as jnp
from jax.experimental import pallas as pl
from jax.experimental.pallas import tpu as pltpu

H = 10            # real LSTM hidden size per direction (PyTorch model)
HP = 64           # padded hidden size per direction (lane-friendly)
G = 2 * HP        # per-gate group width: [fwd | bwd] = 128 lanes (one vreg)
NG = 4 * G        # total packed gate width (i, f, g, o) = 512 lanes


def bilstm_linear_kernel(x_ref,        # (B, T)        input, batch on sublanes
                         wx_f_ref,     # (1, NG)       packed fwd input weights
                         wx_b_ref,     # (1, NG)       packed bwd input weights
                         wblk_ref,     # (2*HP, NG)    block-diag recurrent weights
                         bias_ref,     # (1, NG)       packed (b_ih + b_hh)
                         wrow_f_ref,   # (1, 2*HP)     final-linear fwd half
                         wrow_b_ref,   # (1, 2*HP)     final-linear bwd half
                         bfin_ref,     # (1, 1)        final-linear bias
                         out_ref):     # (T, B)        output
    B, T = x_ref.shape

    x_bt = x_ref[...]                       # (B, T)
    wx_f = wx_f_ref[...]                    # (1, NG)
    wx_b = wx_b_ref[...]                    # (1, NG)
    wblk = wblk_ref[...]                    # (2*HP, NG)
    wrow_f = wrow_f_ref[...]                # (1, 2*HP)
    wrow_b = wrow_b_ref[...]                # (1, 2*HP)
    bias_b = jnp.broadcast_to(bias_ref[...], (B, NG))   # hoisted broadcast

    h = jnp.zeros((B, 2 * HP), jnp.float32)   # lanes [0:HP]=fwd, [HP:2HP]=bwd
    c = jnp.zeros((B, 2 * HP), jnp.float32)
    h_steps = []

    # Fully unrolled fused recurrence: step s runs the forward cell on x[:, s]
    # and the backward cell on x[:, T-1-s] simultaneously.
    for s in range(T):
        xf = x_bt[:, s:s + 1]               # (B, 1) fwd input at time s
        xb = x_bt[:, T - 1 - s:T - s]       # (B, 1) bwd input at time T-1-s
        gates = (jnp.dot(h, wblk, preferred_element_type=jnp.float32)
                 + xf * wx_f + xb * wx_b + bias_b)        # (B, NG)
        # Gate order i, f, g, o; each slice is a full 128-lane (fwd||bwd) group.
        i = jax.nn.sigmoid(gates[:, 0 * G:1 * G])
        f = jax.nn.sigmoid(gates[:, 1 * G:2 * G])
        g = jnp.tanh(gates[:, 2 * G:3 * G])
        o = jax.nn.sigmoid(gates[:, 3 * G:4 * G])
        c = f * c + i * g
        h = o * jnp.tanh(c)
        h_steps.append(h)

    # Final Linear(20 -> 1), hoisted out of the recurrence:
    #   out[t] = h_fwd(t) . w_f + h_bwd(t) . w_b + b
    # h_fwd(t) lives in h_steps[t][:, :HP]; h_bwd(t) in h_steps[T-1-t][:, HP:].
    h_f = jnp.stack(h_steps, axis=0)          # (T, B, 2*HP)
    h_b = jnp.stack(h_steps[::-1], axis=0)    # (T, B, 2*HP)
    y = jnp.sum(h_f * wrow_f[None, :, :] + h_b * wrow_b[None, :, :], axis=-1)
    out_ref[...] = y + bfin_ref[...]          # (T, B), single dense store


def model_forward(x, kp):
    """x: (B, T, 1) float32, batch_first like the PyTorch module."""
    B, T, _ = x.shape
    BP = ((B + 7) // 8) * 8                   # sublane-align the batch dim
    x_bt = x[:, :, 0]                         # (B, T) — drop singleton channel
    if BP != B:
        x_bt = jnp.pad(x_bt, ((0, BP - B), (0, 0)))

    vmem = pl.BlockSpec(memory_space=pltpu.MemorySpace.VMEM)
    out_tb = pl.pallas_call(
        bilstm_linear_kernel,
        out_shape=jax.ShapeDtypeStruct((T, BP), jnp.float32),
        in_specs=[vmem] * 8,
        out_specs=vmem,
    )(x_bt, kp["wx_f"], kp["wx_b"], kp["wblk"], kp["bias"],
      kp["wrow_f"], kp["wrow_b"], kp["bfin"])

    return jnp.transpose(out_tb)[:B, :, None]  # (B, T, 1)


def pack_params(raw):
    """Pack PyTorch-layout weights into the padded fused-kernel layout."""
    b_f = raw["bih_f"] + raw["bhh_f"]
    b_b = raw["bih_b"] + raw["bhh_b"]

    wx_f = jnp.zeros((1, NG), jnp.float32)
    wx_b = jnp.zeros((1, NG), jnp.float32)
    bias = jnp.zeros((1, NG), jnp.float32)
    wblk = jnp.zeros((2 * HP, NG), jnp.float32)

    for k in range(4):                        # PyTorch gate order: i, f, g, o
        rows = slice(k * H, (k + 1) * H)      # rows in the (4H, .) PyTorch weights
        cf = slice(k * G, k * G + H)          # packed fwd-gate lanes
        cb = slice(k * G + HP, k * G + HP + H)  # packed bwd-gate lanes
        wx_f = wx_f.at[0, cf].set(raw["wih_f"][rows, 0])
        wx_b = wx_b.at[0, cb].set(raw["wih_b"][rows, 0])
        bias = bias.at[0, cf].set(b_f[rows])
        bias = bias.at[0, cb].set(b_b[rows])
        wblk = wblk.at[0:H, cf].set(raw["whh_f"][rows, :].T)
        wblk = wblk.at[HP:HP + H, cb].set(raw["whh_b"][rows, :].T)

    wrow_f = jnp.zeros((1, 2 * HP), jnp.float32).at[0, 0:H].set(raw["w_fin"][0, 0:H])
    wrow_b = jnp.zeros((1, 2 * HP), jnp.float32).at[0, HP:HP + H].set(raw["w_fin"][0, H:2 * H])
    bfin = raw["b_fin"].reshape(1, 1)

    return {"wx_f": wx_f, "wx_b": wx_b, "wblk": wblk, "bias": bias,
            "wrow_f": wrow_f, "wrow_b": wrow_b, "bfin": bfin}


def ref_forward(x, raw):
    """Pure-JAX reference (PyTorch semantics, batch-first) for correctness."""
    B, T, _ = x.shape

    def run(wih, whh, b, reverse):
        h = jnp.zeros((B, H), jnp.float32)
        c = jnp.zeros((B, H), jnp.float32)
        outs = [None] * T
        order = range(T - 1, -1, -1) if reverse else range(T)
        for t in order:
            gates = x[:, t, :] @ wih.T + h @ whh.T + b
            i = jax.nn.sigmoid(gates[:, :H])
            f = jax.nn.sigmoid(gates[:, H:2 * H])
            g = jnp.tanh(gates[:, 2 * H:3 * H])
            o = jax.nn.sigmoid(gates[:, 3 * H:])
            c = f * c + i * g
            h = o * jnp.tanh(c)
            outs[t] = h
        return jnp.stack(outs, axis=1)        # (B, T, H)

    hf = run(raw["wih_f"], raw["whh_f"], raw["bih_f"] + raw["bhh_f"], False)
    hb = run(raw["wih_b"], raw["whh_b"], raw["bih_b"] + raw["bhh_b"], True)
    hcat = jnp.concatenate([hf, hb], axis=-1)            # (B, T, 2H)
    return hcat @ raw["w_fin"].T + raw["b_fin"]          # (B, T, 1)


def make_raw_params(key):
    ks = jax.random.split(key, 11)

    def u(k, shape, bound):
        return jax.random.uniform(k, shape, jnp.float32, -bound, bound)

    kl = 1.0 / (H ** 0.5)                     # PyTorch LSTM uniform bound
    fan_in = 2 * H
    raw = {
        "wih_f": u(ks[0], (4 * H, 1), kl),
        "whh_f": u(ks[1], (4 * H, H), kl),
        "bih_f": u(ks[2], (4 * H,), kl),
        "bhh_f": u(ks[3], (4 * H,), kl),
        "wih_b": u(ks[4], (4 * H, 1), kl),
        "whh_b": u(ks[5], (4 * H, H), kl),
        "bih_b": u(ks[6], (4 * H,), kl),
        "bhh_b": u(ks[7], (4 * H,), kl),
        "w_fin": u(ks[8], (1, 2 * H), (6.0 / fan_in) ** 0.5),   # kaiming_uniform fan_in
        "b_fin": u(ks[9], (1,), 1.0 / (fan_in ** 0.5)),
    }
    return raw, ks[10]


if __name__ == "__main__":
    raw, kx = make_raw_params(jax.random.PRNGKey(0))
    kp = pack_params(raw)

    B, T = 2, 8
    x = jax.random.normal(kx, (B, T, 1), jnp.float32)   # (batch, seq, input=1)

    out = jax.block_until_ready(model_forward(x, kp))
    ref = jax.block_until_ready(ref_forward(x, raw))

    assert out.shape == (B, T, 1), out.shape
    assert jnp.allclose(out, ref, rtol=1e-5, atol=1e-5), (
        f"max abs err = {jnp.max(jnp.abs(out - ref))}")

    print("KERNEL_OK")
</pallas_src>

<mosaic_0001>
module attributes {stable_mosaic.version = 11 : i64} {
  func.func @bilstm_linear_kernel(%arg0: memref<8x8xf32, #tpu.memory_space<vmem>>, %arg1: memref<1x512xf32, #tpu.memory_space<vmem>>, %arg2: memref<1x512xf32, #tpu.memory_space<vmem>>, %arg3: memref<128x512xf32, #tpu.memory_space<vmem>>, %arg4: memref<1x512xf32, #tpu.memory_space<vmem>>, %arg5: memref<1x128xf32, #tpu.memory_space<vmem>>, %arg6: memref<1x128xf32, #tpu.memory_space<vmem>>, %arg7: memref<1x1xf32, #tpu.memory_space<vmem>>, %arg8: memref<8x8xf32, #tpu.memory_space<vmem>>) attributes {dimension_semantics = [], scalar_prefetch = 0 : i64, scratch_operands = 0 : i64, tpu.core_type = #tpu.core_type<tc>} {
    %c0 = arith.constant 0 : index
    %c0_0 = arith.constant 0 : index
    %0 = vector.load %arg0[%c0, %c0_0] : memref<8x8xf32, #tpu.memory_space<vmem>>, vector<8x8xf32>
    %c0_1 = arith.constant 0 : index
    %c0_2 = arith.constant 0 : index
    %1 = vector.load %arg1[%c0_1, %c0_2] : memref<1x512xf32, #tpu.memory_space<vmem>>, vector<1x512xf32>
    %c0_3 = arith.constant 0 : index
    %c0_4 = arith.constant 0 : index
    %2 = vector.load %arg2[%c0_3, %c0_4] : memref<1x512xf32, #tpu.memory_space<vmem>>, vector<1x512xf32>
    %c0_5 = arith.constant 0 : index
    %c0_6 = arith.constant 0 : index
    %3 = vector.load %arg3[%c0_5, %c0_6] : memref<128x512xf32, #tpu.memory_space<vmem>>, vector<128x512xf32>
    %c0_7 = arith.constant 0 : index
    %c0_8 = arith.constant 0 : index
    %4 = vector.load %arg5[%c0_7, %c0_8] : memref<1x128xf32, #tpu.memory_space<vmem>>, vector<1x128xf32>
    %c0_9 = arith.constant 0 : index
    %c0_10 = arith.constant 0 : index
    %5 = vector.load %arg6[%c0_9, %c0_10] : memref<1x128xf32, #tpu.memory_space<vmem>>, vector<1x128xf32>
    %c0_11 = arith.constant 0 : index
    %c0_12 = arith.constant 0 : index
    %6 = vector.load %arg4[%c0_11, %c0_12] : memref<1x512xf32, #tpu.memory_space<vmem>>, vector<1x512xf32>
    %7 = vector.shape_cast %6 : vector<1x512xf32> to vector<1x512xf32>
    %8 = vector.broadcast %7 : vector<1x512xf32> to vector<8x512xf32>
    %cst = arith.constant 0.000000e+00 : f32
    %9 = vector.broadcast %cst : f32 to vector<8x128xf32>
    %cst_13 = arith.constant 0.000000e+00 : f32
    %10 = vector.broadcast %cst_13 : f32 to vector<8x128xf32>
    %11 = vector.extract_strided_slice %0 {offsets = [0, 0], sizes = [8, 1], strides = [1, 1]} : vector<8x8xf32> to vector<8x1xf32>
    %12 = vector.extract_strided_slice %0 {offsets = [0, 7], sizes = [8, 1], strides = [1, 1]} : vector<8x8xf32> to vector<8x1xf32>
    %cst_14 = arith.constant dense<0.000000e+00> : vector<8x512xf32>
    %13 = tpu.matmul %9, %3, %cst_14 {dimension_numbers = #tpu.dot_dimension_numbers<[1], [0], [0], [1], [0, 0, 1, 1], [], []>} : vector<8x128xf32>, vector<128x512xf32>, vector<8x512xf32> -> vector<8x512xf32>
    %14 = vector.broadcast %11 : vector<8x1xf32> to vector<8x512xf32>
    %15 = vector.broadcast %1 : vector<1x512xf32> to vector<8x512xf32>
    %16 = arith.mulf %14, %15 : vector<8x512xf32>
    %17 = arith.addf %13, %16 : vector<8x512xf32>
    %18 = vector.broadcast %12 : vector<8x1xf32> to vector<8x512xf32>
    %19 = vector.broadcast %2 : vector<1x512xf32> to vector<8x512xf32>
    %20 = arith.mulf %18, %19 : vector<8x512xf32>
    %21 = arith.addf %17, %20 : vector<8x512xf32>
    %22 = arith.addf %21, %8 : vector<8x512xf32>
    %23 = vector.extract_strided_slice %22 {offsets = [0, 0], sizes = [8, 128], strides = [1, 1]} : vector<8x512xf32> to vector<8x128xf32>
    %24 = arith.negf %23 : vector<8x128xf32>
    %25 = math.exp %24 : vector<8x128xf32>
    %cst_15 = arith.constant 1.000000e+00 : f32
    %26 = vector.broadcast %cst_15 : f32 to vector<8x128xf32>
    %27 = arith.addf %26, %25 : vector<8x128xf32>
    %28 = arith.divf %26, %27 : vector<8x128xf32>
    %29 = vector.extract_strided_slice %22 {offsets = [0, 128], sizes = [8, 128], strides = [1, 1]} : vector<8x512xf32> to vector<8x128xf32>
    %30 = arith.negf %29 : vector<8x128xf32>
    %31 = math.exp %30 : vector<8x128xf32>
    %cst_16 = arith.constant 1.000000e+00 : f32
    %32 = vector.broadcast %cst_16 : f32 to vector<8x128xf32>
    %33 = arith.addf %32, %31 : vector<8x128xf32>
    %34 = arith.divf %32, %33 : vector<8x128xf32>
    %35 = vector.extract_strided_slice %22 {offsets = [0, 256], sizes = [8, 128], strides = [1, 1]} : vector<8x512xf32> to vector<8x128xf32>
    %36 = math.tanh %35 : vector<8x128xf32>
    %37 = vector.extract_strided_slice %22 {offsets = [0, 384], sizes = [8, 128], strides = [1, 1]} : vector<8x512xf32> to vector<8x128xf32>
    %38 = arith.negf %37 : vector<8x128xf32>
    %39 = math.exp %38 : vector<8x128xf32>
    %cst_17 = arith.constant 1.000000e+00 : f32
    %40 = vector.broadcast %cst_17 : f32 to vector<8x128xf32>
    %41 = arith.addf %40, %39 : vector<8x128xf32>
    %42 = arith.divf %40, %41 : vector<8x128xf32>
    %43 = arith.mulf %34, %10 : vector<8x128xf32>
    %44 = arith.mulf %28, %36 : vector<8x128xf32>
    %45 = arith.addf %43, %44 : vector<8x128xf32>
    %46 = math.tanh %45 : vector<8x128xf32>
    %47 = arith.mulf %42, %46 : vector<8x128xf32>
    %48 = vector.extract_strided_slice %0 {offsets = [0, 1], sizes = [8, 1], strides = [1, 1]} : vector<8x8xf32> to vector<8x1xf32>
    %49 = vector.extract_strided_slice %0 {offsets = [0, 6], sizes = [8, 1], strides = [1, 1]} : vector<8x8xf32> to vector<8x1xf32>
    %cst_18 = arith.constant dense<0.000000e+00> : vector<8x512xf32>
    %50 = tpu.matmul %47, %3, %cst_18 {dimension_numbers = #tpu.dot_dimension_numbers<[1], [0], [0], [1], [0, 0, 1, 1], [], []>} : vector<8x128xf32>, vector<128x512xf32>, vector<8x512xf32> -> vector<8x512xf32>
    %51 = vector.broadcast %48 : vector<8x1xf32> to vector<8x512xf32>
    %52 = vector.broadcast %1 : vector<1x512xf32> to vector<8x512xf32>
    %53 = arith.mulf %51, %52 : vector<8x512xf32>
    %54 = arith.addf %50, %53 : vector<8x512xf32>
    %55 = vector.broadcast %49 : vector<8x1xf32> to vector<8x512xf32>
    %56 = vector.broadcast %2 : vector<1x512xf32> to vector<8x512xf32>
    %57 = arith.mulf %55, %56 : vector<8x512xf32>
    %58 = arith.addf %54, %57 : vector<8x512xf32>
    %59 = arith.addf %58, %8 : vector<8x512xf32>
    %60 = vector.extract_strided_slice %59 {offsets = [0, 0], sizes = [8, 128], strides = [1, 1]} : vector<8x512xf32> to vector<8x128xf32>
    %61 = arith.negf %60 : vector<8x128xf32>
    %62 = math.exp %61 : vector<8x128xf32>
    %cst_19 = arith.constant 1.000000e+00 : f32
    %63 = vector.broadcast %cst_19 : f32 to vector<8x128xf32>
    %64 = arith.addf %63, %62 : vector<8x128xf32>
    %65 = arith.divf %63, %64 : vector<8x128xf32>
    %66 = vector.extract_strided_slice %59 {offsets = [0, 128], sizes = [8, 128], strides = [1, 1]} : vector<8x512xf32> to vector<8x128xf32>
    %67 = arith.negf %66 : vector<8x128xf32>
    %68 = math.exp %67 : vector<8x128xf32>
    %cst_20 = arith.constant 1.000000e+00 : f32
    %69 = vector.broadcast %cst_20 : f32 to vector<8x128xf32>
    %70 = arith.addf %69, %68 : vector<8x128xf32>
    %71 = arith.divf %69, %70 : vector<8x128xf32>
    %72 = vector.extract_strided_slice %59 {offsets = [0, 256], sizes = [8, 128], strides = [1, 1]} : vector<8x512xf32> to vector<8x128xf32>
    %73 = math.tanh %72 : vector<8x128xf32>
    %74 = vector.extract_strided_slice %59 {offsets = [0, 384], sizes = [8, 128], strides = [1, 1]} : vector<8x512xf32> to vector<8x128xf32>
    %75 = arith.negf %74 : vector<8x128xf32>
    %76 = math.exp %75 : vector<8x128xf32>
    %cst_21 = arith.constant 1.000000e+00 : f32
    %77 = vector.broadcast %cst_21 : f32 to vector<8x128xf32>
    %78 = arith.addf %77, %76 : vector<8x128xf32>
    %79 = arith.divf %77, %78 : vector<8x128xf32>
    %80 = arith.mulf %71, %45 : vector<8x128xf32>
    %81 = arith.mulf %65, %73 : vector<8x128xf32>
    %82 = arith.addf %80, %81 : vector<8x128xf32>
    %83 = math.tanh %82 : vector<8x128xf32>
    %84 = arith.mulf %79, %83 : vector<8x128xf32>
    %85 = vector.extract_strided_slice %0 {offsets = [0, 2], sizes = [8, 1], strides = [1, 1]} : vector<8x8xf32> to vector<8x1xf32>
    %86 = vector.extract_strided_slice %0 {offsets = [0, 5], sizes = [8, 1], strides = [1, 1]} : vector<8x8xf32> to vector<8x1xf32>
    %cst_22 = arith.constant dense<0.000000e+00> : vector<8x512xf32>
    %87 = tpu.matmul %84, %3, %cst_22 {dimension_numbers = #tpu.dot_dimension_numbers<[1], [0], [0], [1], [0, 0, 1, 1], [], []>} : vector<8x128xf32>, vector<128x512xf32>, vector<8x512xf32> -> vector<8x512xf32>
    %88 = vector.broadcast %85 : vector<8x1xf32> to vector<8x512xf32>
    %89 = vector.broadcast %1 : vector<1x512xf32> to vector<8x512xf32>
    %90 = arith.mulf %88, %89 : vector<8x512xf32>
    %91 = arith.addf %87, %90 : vector<8x512xf32>
    %92 = vector.broadcast %86 : vector<8x1xf32> to vector<8x512xf32>
    %93 = vector.broadcast %2 : vector<1x512xf32> to vector<8x512xf32>
    %94 = arith.mulf %92, %93 : vector<8x512xf32>
    %95 = arith.addf %91, %94 : vector<8x512xf32>
    %96 = arith.addf %95, %8 : vector<8x512xf32>
    %97 = vector.extract_strided_slice %96 {offsets = [0, 0], sizes = [8, 128], strides = [1, 1]} : vector<8x512xf32> to vector<8x128xf32>
    %98 = arith.negf %97 : vector<8x128xf32>
    %99 = math.exp %98 : vector<8x128xf32>
    %cst_23 = arith.constant 1.000000e+00 : f32
    %100 = vector.broadcast %cst_23 : f32 to vector<8x128xf32>
    %101 = arith.addf %100, %99 : vector<8x128xf32>
    %102 = arith.divf %100, %101 : vector<8x128xf32>
    %103 = vector.extract_strided_slice %96 {offsets = [0, 128], sizes = [8, 128], strides = [1, 1]} : vector<8x512xf32> to vector<8x128xf32>
    %104 = arith.negf %103 : vector<8x128xf32>
    %105 = math.exp %104 : vector<8x128xf32>
    %cst_24 = arith.constant 1.000000e+00 : f32
    %106 = vector.broadcast %cst_24 : f32 to vector<8x128xf32>
    %107 = arith.addf %106, %105 : vector<8x128xf32>
    %108 = arith.divf %106, %107 : vector<8x128xf32>
    %109 = vector.extract_strided_slice %96 {offsets = [0, 256], sizes = [8, 128], strides = [1, 1]} : vector<8x512xf32> to vector<8x128xf32>
    %110 = math.tanh %109 : vector<8x128xf32>
    %111 = vector.extract_strided_slice %96 {offsets = [0, 384], sizes = [8, 128], strides = [1, 1]} : vector<8x512xf32> to vector<8x128xf32>
    %112 = arith.negf %111 : vector<8x128xf32>
    %113 = math.exp %112 : vector<8x128xf32>
    %cst_25 = arith.constant 1.000000e+00 : f32
    %114 = vector.broadcast %cst_25 : f32 to vector<8x128xf32>
    %115 = arith.addf %114, %113 : vector<8x128xf32>
    %116 = arith.divf %114, %115 : vector<8x128xf32>
    %117 = arith.mulf %108, %82 : vector<8x128xf32>
    %118 = arith.mulf %102, %110 : vector<8x128xf32>
    %119 = arith.addf %117, %118 : vector<8x128xf32>
    %120 = math.tanh %119 : vector<8x128xf32>
    %121 = arith.mulf %116, %120 : vector<8x128xf32>
    %122 = vector.extract_strided_slice %0 {offsets = [0, 3], sizes = [8, 1], strides = [1, 1]} : vector<8x8xf32> to vector<8x1xf32>
    %123 = vector.extract_strided_slice %0 {offsets = [0, 4], sizes = [8, 1], strides = [1, 1]} : vector<8x8xf32> to vector<8x1xf32>
    %cst_26 = arith.constant dense<0.000000e+00> : vector<8x512xf32>
    %124 = tpu.matmul %121, %3, %cst_26 {dimension_numbers = #tpu.dot_dimension_numbers<[1], [0], [0], [1], [0, 0, 1, 1], [], []>} : vector<8x128xf32>, vector<128x512xf32>, vector<8x512xf32> -> vector<8x512xf32>
    %125 = vector.broadcast %122 : vector<8x1xf32> to vector<8x512xf32>
    %126 = vector.broadcast %1 : vector<1x512xf32> to vector<8x512xf32>
    %127 = arith.mulf %125, %126 : vector<8x512xf32>
    %128 = arith.addf %124, %127 : vector<8x512xf32>
    %129 = vector.broadcast %123 : vector<8x1xf32> to vector<8x512xf32>
    %130 = vector.broadcast %2 : vector<1x512xf32> to vector<8x512xf32>
    %131 = arith.mulf %129, %130 : vector<8x512xf32>
    %132 = arith.addf %128, %131 : vector<8x512xf32>
    %133 = arith.addf %132, %8 : vector<8x512xf32>
    %134 = vector.extract_strided_slice %133 {offsets = [0, 0], sizes = [8, 128], strides = [1, 1]} : vector<8x512xf32> to vector<8x128xf32>
    %135 = arith.negf %134 : vector<8x128xf32>
    %136 = math.exp %135 : vector<8x128xf32>
    %cst_27 = arith.constant 1.000000e+00 : f32
    %137 = vector.broadcast %cst_27 : f32 to vector<8x128xf32>
    %138 = arith.addf %137, %136 : vector<8x128xf32>
    %139 = arith.divf %137, %138 : vector<8x128xf32>
    %140 = vector.extract_strided_slice %133 {offsets = [0, 128], sizes = [8, 128], strides = [1, 1]} : vector<8x512xf32> to vector<8x128xf32>
    %141 = arith.negf %140 : vector<8x128xf32>
    %142 = math.exp %141 : vector<8x128xf32>
    %cst_28 = arith.constant 1.000000e+00 : f32
    %143 = vector.broadcast %cst_28 : f32 to vector<8x128xf32>
    %144 = arith.addf %143, %142 : vector<8x128xf32>
    %145 = arith.divf %143, %144 : vector<8x128xf32>
    %146 = vector.extract_strided_slice %133 {offsets = [0, 256], sizes = [8, 128], strides = [1, 1]} : vector<8x512xf32> to vector<8x128xf32>
    %147 = math.tanh %146 : vector<8x128xf32>
    %148 = vector.extract_strided_slice %133 {offsets = [0, 384], sizes = [8, 128], strides = [1, 1]} : vector<8x512xf32> to vector<8x128xf32>
    %149 = arith.negf %148 : vector<8x128xf32>
    %150 = math.exp %149 : vector<8x128xf32>
    %cst_29 = arith.constant 1.000000e+00 : f32
    %151 = vector.broadcast %cst_29 : f32 to vector<8x128xf32>
    %152 = arith.addf %151, %150 : vector<8x128xf32>
    %153 = arith.divf %151, %152 : vector<8x128xf32>
    %154 = arith.mulf %145, %119 : vector<8x128xf32>
    %155 = arith.mulf %139, %147 : vector<8x128xf32>
    %156 = arith.addf %154, %155 : vector<8x128xf32>
    %157 = math.tanh %156 : vector<8x128xf32>
    %158 = arith.mulf %153, %157 : vector<8x128xf32>
    %159 = vector.extract_strided_slice %0 {offsets = [0, 4], sizes = [8, 1], strides = [1, 1]} : vector<8x8xf32> to vector<8x1xf32>
    %160 = vector.extract_strided_slice %0 {offsets = [0, 3], sizes = [8, 1], strides = [1, 1]} : vector<8x8xf32> to vector<8x1xf32>
    %cst_30 = arith.constant dense<0.000000e+00> : vector<8x512xf32>
    %161 = tpu.matmul %158, %3, %cst_30 {dimension_numbers = #tpu.dot_dimension_numbers<[1], [0], [0], [1], [0, 0, 1, 1], [], []>} : vector<8x128xf32>, vector<128x512xf32>, vector<8x512xf32> -> vector<8x512xf32>
    %162 = vector.broadcast %159 : vector<8x1xf32> to vector<8x512xf32>
    %163 = vector.broadcast %1 : vector<1x512xf32> to vector<8x512xf32>
    %164 = arith.mulf %162, %163 : vector<8x512xf32>
    %165 = arith.addf %161, %164 : vector<8x512xf32>
    %166 = vector.broadcast %160 : vector<8x1xf32> to vector<8x512xf32>
    %167 = vector.broadcast %2 : vector<1x512xf32> to vector<8x512xf32>
    %168 = arith.mulf %166, %167 : vector<8x512xf32>
    %169 = arith.addf %165, %168 : vector<8x512xf32>
    %170 = arith.addf %169, %8 : vector<8x512xf32>
    %171 = vector.extract_strided_slice %170 {offsets = [0, 0], sizes = [8, 128], strides = [1, 1]} : vector<8x512xf32> to vector<8x128xf32>
    %172 = arith.negf %171 : vector<8x128xf32>
    %173 = math.exp %172 : vector<8x128xf32>
    %cst_31 = arith.constant 1.000000e+00 : f32
    %174 = vector.broadcast %cst_31 : f32 to vector<8x128xf32>
    %175 = arith.addf %174, %173 : vector<8x128xf32>
    %176 = arith.divf %174, %175 : vector<8x128xf32>
    %177 = vector.extract_strided_slice %170 {offsets = [0, 128], sizes = [8, 128], strides = [1, 1]} : vector<8x512xf32> to vector<8x128xf32>
    %178 = arith.negf %177 : vector<8x128xf32>
    %179 = math.exp %178 : vector<8x128xf32>
    %cst_32 = arith.constant 1.000000e+00 : f32
    %180 = vector.broadcast %cst_32 : f32 to vector<8x128xf32>
    %181 = arith.addf %180, %179 : vector<8x128xf32>
    %182 = arith.divf %180, %181 : vector<8x128xf32>
    %183 = vector.extract_strided_slice %170 {offsets = [0, 256], sizes = [8, 128], strides = [1, 1]} : vector<8x512xf32> to vector<8x128xf32>
    %184 = math.tanh %183 : vector<8x128xf32>
    %185 = vector.extract_strided_slice %170 {offsets = [0, 384], sizes = [8, 128], strides = [1, 1]} : vector<8x512xf32> to vector<8x128xf32>
    %186 = arith.negf %185 : vector<8x128xf32>
    %187 = math.exp %186 : vector<8x128xf32>
    %cst_33 = arith.constant 1.000000e+00 : f32
    %188 = vector.broadcast %cst_33 : f32 to vector<8x128xf32>
    %189 = arith.addf %188, %187 : vector<8x128xf32>
    %190 = arith.divf %188, %189 : vector<8x128xf32>
    %191 = arith.mulf %182, %156 : vector<8x128xf32>
    %192 = arith.mulf %176, %184 : vector<8x128xf32>
    %193 = arith.addf %191, %192 : vector<8x128xf32>
    %194 = math.tanh %193 : vector<8x128xf32>
    %195 = arith.mulf %190, %194 : vector<8x128xf32>
    %196 = vector.extract_strided_slice %0 {offsets = [0, 5], sizes = [8, 1], strides = [1, 1]} : vector<8x8xf32> to vector<8x1xf32>
    %197 = vector.extract_strided_slice %0 {offsets = [0, 2], sizes = [8, 1], strides = [1, 1]} : vector<8x8xf32> to vector<8x1xf32>
    %cst_34 = arith.constant dense<0.000000e+00> : vector<8x512xf32>
    %198 = tpu.matmul %195, %3, %cst_34 {dimension_numbers = #tpu.dot_dimension_numbers<[1], [0], [0], [1], [0, 0, 1, 1], [], []>} : vector<8x128xf32>, vector<128x512xf32>, vector<8x512xf32> -> vector<8x512xf32>
    %199 = vector.broadcast %196 : vector<8x1xf32> to vector<8x512xf32>
    %200 = vector.broadcast %1 : vector<1x512xf32> to vector<8x512xf32>
    %201 = arith.mulf %199, %200 : vector<8x512xf32>
    %202 = arith.addf %198, %201 : vector<8x512xf32>
    %203 = vector.broadcast %197 : vector<8x1xf32> to vector<8x512xf32>
    %204 = vector.broadcast %2 : vector<1x512xf32> to vector<8x512xf32>
    %205 = arith.mulf %203, %204 : vector<8x512xf32>
    %206 = arith.addf %202, %205 : vector<8x512xf32>
    %207 = arith.addf %206, %8 : vector<8x512xf32>
    %208 = vector.extract_strided_slice %207 {offsets = [0, 0], sizes = [8, 128], strides = [1, 1]} : vector<8x512xf32> to vector<8x128xf32>
    %209 = arith.negf %208 : vector<8x128xf32>
    %210 = math.exp %209 : vector<8x128xf32>
    %cst_35 = arith.constant 1.000000e+00 : f32
    %211 = vector.broadcast %cst_35 : f32 to vector<8x128xf32>
    %212 = arith.addf %211, %210 : vector<8x128xf32>
    %213 = arith.divf %211, %212 : vector<8x128xf32>
    %214 = vector.extract_strided_slice %207 {offsets = [0, 128], sizes = [8, 128], strides = [1, 1]} : vector<8x512xf32> to vector<8x128xf32>
    %215 = arith.negf %214 : vector<8x128xf32>
    %216 = math.exp %215 : vector<8x128xf32>
    %cst_36 = arith.constant 1.000000e+00 : f32
    %217 = vector.broadcast %cst_36 : f32 to vector<8x128xf32>
    %218 = arith.addf %217, %216 : vector<8x128xf32>
    %219 = arith.divf %217, %218 : vector<8x128xf32>
    %220 = vector.extract_strided_slice %207 {offsets = [0, 256], sizes = [8, 128], strides = [1, 1]} : vector<8x512xf32> to vector<8x128xf32>
    %221 = math.tanh %220 : vector<8x128xf32>
    %222 = vector.extract_strided_slice %207 {offsets = [0, 384], sizes = [8, 128], strides = [1, 1]} : vector<8x512xf32> to vector<8x128xf32>
    %223 = arith.negf %222 : vector<8x128xf32>
    %224 = math.exp %223 : vector<8x128xf32>
    %cst_37 = arith.constant 1.000000e+00 : f32
    %225 = vector.broadcast %cst_37 : f32 to vector<8x128xf32>
    %226 = arith.addf %225, %224 : vector<8x128xf32>
    %227 = arith.divf %225, %226 : vector<8x128xf32>
    %228 = arith.mulf %219, %193 : vector<8x128xf32>
    %229 = arith.mulf %213, %221 : vector<8x128xf32>
    %230 = arith.addf %228, %229 : vector<8x128xf32>
    %231 = math.tanh %230 : vector<8x128xf32>
    %232 = arith.mulf %227, %231 : vector<8x128xf32>
    %233 = vector.extract_strided_slice %0 {offsets = [0, 6], sizes = [8, 1], strides = [1, 1]} : vector<8x8xf32> to vector<8x1xf32>
    %234 = vector.extract_strided_slice %0 {offsets = [0, 1], sizes = [8, 1], strides = [1, 1]} : vector<8x8xf32> to vector<8x1xf32>
    %cst_38 = arith.constant dense<0.000000e+00> : vector<8x512xf32>
    %235 = tpu.matmul %232, %3, %cst_38 {dimension_numbers = #tpu.dot_dimension_numbers<[1], [0], [0], [1], [0, 0, 1, 1], [], []>} : vector<8x128xf32>, vector<128x512xf32>, vector<8x512xf32> -> vector<8x512xf32>
    %236 = vector.broadcast %233 : vector<8x1xf32> to vector<8x512xf32>
    %237 = vector.broadcast %1 : vector<1x512xf32> to vector<8x512xf32>
    %238 = arith.mulf %236, %237 : vector<8x512xf32>
    %239 = arith.addf %235, %238 : vector<8x512xf32>
    %240 = vector.broadcast %234 : vector<8x1xf32> to vector<8x512xf32>
    %241 = vector.broadcast %2 : vector<1x512xf32> to vector<8x512xf32>
    %242 = arith.mulf %240, %241 : vector<8x512xf32>
    %243 = arith.addf %239, %242 : vector<8x512xf32>
    %244 = arith.addf %243, %8 : vector<8x512xf32>
    %245 = vector.extract_strided_slice %244 {offsets = [0, 0], sizes = [8, 128], strides = [1, 1]} : vector<8x512xf32> to vector<8x128xf32>
    %246 = arith.negf %245 : vector<8x128xf32>
    %247 = math.exp %246 : vector<8x128xf32>
    %cst_39 = arith.constant 1.000000e+00 : f32
    %248 = vector.broadcast %cst_39 : f32 to vector<8x128xf32>
    %249 = arith.addf %248, %247 : vector<8x128xf32>
    %250 = arith.divf %248, %249 : vector<8x128xf32>
    %251 = vector.extract_strided_slice %244 {offsets = [0, 128], sizes = [8, 128], strides = [1, 1]} : vector<8x512xf32> to vector<8x128xf32>
    %252 = arith.negf %251 : vector<8x128xf32>
    %253 = math.exp %252 : vector<8x128xf32>
    %cst_40 = arith.constant 1.000000e+00 : f32
    %254 = vector.broadcast %cst_40 : f32 to vector<8x128xf32>
    %255 = arith.addf %254, %253 : vector<8x128xf32>
    %256 = arith.divf %254, %255 : vector<8x128xf32>
    %257 = vector.extract_strided_slice %244 {offsets = [0, 256], sizes = [8, 128], strides = [1, 1]} : vector<8x512xf32> to vector<8x128xf32>
    %258 = math.tanh %257 : vector<8x128xf32>
    %259 = vector.extract_strided_slice %244 {offsets = [0, 384], sizes = [8, 128], strides = [1, 1]} : vector<8x512xf32> to vector<8x128xf32>
    %260 = arith.negf %259 : vector<8x128xf32>
    %261 = math.exp %260 : vector<8x128xf32>
    %cst_41 = arith.constant 1.000000e+00 : f32
    %262 = vector.broadcast %cst_41 : f32 to vector<8x128xf32>
    %263 = arith.addf %262, %261 : vector<8x128xf32>
    %264 = arith.divf %262, %263 : vector<8x128xf32>
    %265 = arith.mulf %256, %230 : vector<8x128xf32>
    %266 = arith.mulf %250, %258 : vector<8x128xf32>
    %267 = arith.addf %265, %266 : vector<8x128xf32>
    %268 = math.tanh %267 : vector<8x128xf32>
    %269 = arith.mulf %264, %268 : vector<8x128xf32>
    %270 = vector.extract_strided_slice %0 {offsets = [0, 7], sizes = [8, 1], strides = [1, 1]} : vector<8x8xf32> to vector<8x1xf32>
    %271 = vector.extract_strided_slice %0 {offsets = [0, 0], sizes = [8, 1], strides = [1, 1]} : vector<8x8xf32> to vector<8x1xf32>
    %cst_42 = arith.constant dense<0.000000e+00> : vector<8x512xf32>
    %272 = tpu.matmul %269, %3, %cst_42 {dimension_numbers = #tpu.dot_dimension_numbers<[1], [0], [0], [1], [0, 0, 1, 1], [], []>} : vector<8x128xf32>, vector<128x512xf32>, vector<8x512xf32> -> vector<8x512xf32>
    %273 = vector.broadcast %270 : vector<8x1xf32> to vector<8x512xf32>
    %274 = vector.broadcast %1 : vector<1x512xf32> to vector<8x512xf32>
    %275 = arith.mulf %273, %274 : vector<8x512xf32>
    %276 = arith.addf %272, %275 : vector<8x512xf32>
    %277 = vector.broadcast %271 : vector<8x1xf32> to vector<8x512xf32>
    %278 = vector.broadcast %2 : vector<1x512xf32> to vector<8x512xf32>
    %279 = arith.mulf %277, %278 : vector<8x512xf32>
    %280 = arith.addf %276, %279 : vector<8x512xf32>
    %281 = arith.addf %280, %8 : vector<8x512xf32>
    %282 = vector.extract_strided_slice %281 {offsets = [0, 0], sizes = [8, 128], strides = [1, 1]} : vector<8x512xf32> to vector<8x128xf32>
    %283 = arith.negf %282 : vector<8x128xf32>
    %284 = math.exp %283 : vector<8x128xf32>
    %cst_43 = arith.constant 1.000000e+00 : f32
    %285 = vector.broadcast %cst_43 : f32 to vector<8x128xf32>
    %286 = arith.addf %285, %284 : vector<8x128xf32>
    %287 = arith.divf %285, %286 : vector<8x128xf32>
    %288 = vector.extract_strided_slice %281 {offsets = [0, 128], sizes = [8, 128], strides = [1, 1]} : vector<8x512xf32> to vector<8x128xf32>
    %289 = arith.negf %288 : vector<8x128xf32>
    %290 = math.exp %289 : vector<8x128xf32>
    %cst_44 = arith.constant 1.000000e+00 : f32
    %291 = vector.broadcast %cst_44 : f32 to vector<8x128xf32>
    %292 = arith.addf %291, %290 : vector<8x128xf32>
    %293 = arith.divf %291, %292 : vector<8x128xf32>
    %294 = vector.extract_strided_slice %281 {offsets = [0, 256], sizes = [8, 128], strides = [1, 1]} : vector<8x512xf32> to vector<8x128xf32>
    %295 = math.tanh %294 : vector<8x128xf32>
    %296 = vector.extract_strided_slice %281 {offsets = [0, 384], sizes = [8, 128], strides = [1, 1]} : vector<8x512xf32> to vector<8x128xf32>
    %297 = arith.negf %296 : vector<8x128xf32>
    %298 = math.exp %297 : vector<8x128xf32>
    %cst_45 = arith.constant 1.000000e+00 : f32
    %299 = vector.broadcast %cst_45 : f32 to vector<8x128xf32>
    %300 = arith.addf %299, %298 : vector<8x128xf32>
    %301 = arith.divf %299, %300 : vector<8x128xf32>
    %302 = arith.mulf %293, %267 : vector<8x128xf32>
    %303 = arith.mulf %287, %295 : vector<8x128xf32>
    %304 = arith.addf %302, %303 : vector<8x128xf32>
    %305 = math.tanh %304 : vector<8x128xf32>
    %306 = arith.mulf %301, %305 : vector<8x128xf32>
    %307 = vector.shape_cast %47 : vector<8x128xf32> to vector<1x8x128xf32>
    %308 = vector.shape_cast %84 : vector<8x128xf32> to vector<1x8x128xf32>
    %309 = vector.shape_cast %121 : vector<8x128xf32> to vector<1x8x128xf32>
    %310 = vector.shape_cast %158 : vector<8x128xf32> to vector<1x8x128xf32>
    %311 = vector.shape_cast %195 : vector<8x128xf32> to vector<1x8x128xf32>
    %312 = vector.shape_cast %232 : vector<8x128xf32> to vector<1x8x128xf32>
    %313 = vector.shape_cast %269 : vector<8x128xf32> to vector<1x8x128xf32>
    %314 = vector.shape_cast %306 : vector<8x128xf32> to vector<1x8x128xf32>
    %315 = tpu.concatenate %307, %308, %309, %310, %311, %312, %313, %314 in 0 : vector<1x8x128xf32>, vector<1x8x128xf32>, vector<1x8x128xf32>, vector<1x8x128xf32>, vector<1x8x128xf32>, vector<1x8x128xf32>, vector<1x8x128xf32>, vector<1x8x128xf32> -> vector<8x8x128xf32>
    %316 = vector.shape_cast %306 : vector<8x128xf32> to vector<1x8x128xf32>
    %317 = vector.shape_cast %269 : vector<8x128xf32> to vector<1x8x128xf32>
    %318 = vector.shape_cast %232 : vector<8x128xf32> to vector<1x8x128xf32>
    %319 = vector.shape_cast %195 : vector<8x128xf32> to vector<1x8x128xf32>
    %320 = vector.shape_cast %158 : vector<8x128xf32> to vector<1x8x128xf32>
    %321 = vector.shape_cast %121 : vector<8x128xf32> to vector<1x8x128xf32>
    %322 = vector.shape_cast %84 : vector<8x128xf32> to vector<1x8x128xf32>
    %323 = vector.shape_cast %47 : vector<8x128xf32> to vector<1x8x128xf32>
    %324 = tpu.concatenate %316, %317, %318, %319, %320, %321, %322, %323 in 0 : vector<1x8x128xf32>, vector<1x8x128xf32>, vector<1x8x128xf32>, vector<1x8x128xf32>, vector<1x8x128xf32>, vector<1x8x128xf32>, vector<1x8x128xf32>, vector<1x8x128xf32> -> vector<8x8x128xf32>
    %325 = vector.shape_cast %4 : vector<1x128xf32> to vector<1x1x128xf32>
    %326 = vector.broadcast %325 : vector<1x1x128xf32> to vector<8x8x128xf32>
    %327 = arith.mulf %315, %326 : vector<8x8x128xf32>
    %328 = vector.shape_cast %5 : vector<1x128xf32> to vector<1x1x128xf32>
    %329 = vector.broadcast %328 : vector<1x1x128xf32> to vector<8x8x128xf32>
    %330 = arith.mulf %324, %329 : vector<8x8x128xf32>
    %331 = arith.addf %327, %330 : vector<8x8x128xf32>
    %cst_46 = arith.constant dense<0.000000e+00> : vector<8x8xf32>
    %332 = vector.multi_reduction <add>, %331, %cst_46 [2] : vector<8x8x128xf32> to vector<8x8xf32>
    %c0_47 = arith.constant 0 : index
    %c0_48 = arith.constant 0 : index
    %333 = vector.load %arg7[%c0_47, %c0_48] : memref<1x1xf32, #tpu.memory_space<vmem>>, vector<1x1xf32>
    %334 = vector.broadcast %333 : vector<1x1xf32> to vector<8x8xf32>
    %335 = arith.addf %332, %334 : vector<8x8xf32>
    %c0_49 = arith.constant 0 : index
    %c0_50 = arith.constant 0 : index
    %336 = vector.load %arg8[%c0_49, %c0_50] : memref<8x8xf32, #tpu.memory_space<vmem>>, vector<8x8xf32>
    tpu.vector_store %arg8[%c0_49, %c0_50], %335 {strides = array<i32>} : memref<8x8xf32, #tpu.memory_space<vmem>>, vector<8x8xf32>,
    return
  }
}

</mosaic_0001>

<llo_original>
// kernel: tpu_custom_call.1
$region0: #{tpu_custom_call.1}
  #allocation0 [shape = 'u32[]', space=smem, size = 0x4, offset = 0x4, fixed_abs, tag = 'smem constant byte address 0x4 - core index']
  #allocation1 [shape = 'u32[144,128]{1,0:T(1,128)}', space=vmem, size = 0x12000, scoped, tag = 'internal scratch']
  #allocation2 [shape = 'f32[1,1]{1,0:T(1,128)S(1)}', space=vmem, size = 0x200, scoped, tag = 'scoped memory for tpu_custom_call.1']
  %s0 = inlined_call_operand.hbm [shape: f32[8,8], index: 0, kind: input, shape index: {}]
  %s1 = inlined_call_operand.vmem [shape: f32[1,512], index: 1, kind: input, shape index: {}]
  %s2 = inlined_call_operand.vmem [shape: f32[1,512], index: 2, kind: input, shape index: {}]
  %s3 = inlined_call_operand.hbm [shape: f32[128,512], index: 3, kind: input, shape index: {}]
  %s4 = inlined_call_operand.vmem [shape: f32[1,512], index: 4, kind: input, shape index: {}]
  %s5 = inlined_call_operand.vmem [shape: f32[1,128], index: 5, kind: input, shape index: {}]
  %s6 = inlined_call_operand.vmem [shape: f32[1,128], index: 6, kind: input, shape index: {}]
  %s7 = inlined_call_operand.<no memory space> [shape: f32[1,1], index: 7, kind: input, shape index: {}]
  %s8 = inlined_call_operand.hbm [shape: f32[8,8], index: 8, kind: output, shape index: {}]
  %s9 = sld [smem:[#allocation0]]
  $region50: #{tpu_custom_call.1} parent=0
    _
  %s11 = ssub.s32 1, %s9
  %s12 = scalar_select 0, %s11, %s9
  %v13 = vstv %s7
  %14 = vst [vmem:[#allocation2] sm:$0x1] %v13
  $region1: #{tpu_custom_call.1} parent=0
    #allocation3 [shape = 'u8[4096]{0}', space=vmem, size = 0x1000, scoped, tag = 'input window, operand 0, single buffered']
    #allocation4 [shape = 's32[1]{0}', space=sflag, size = 0x4, scoped, tag = 'scoped memory for tpu_custom_call.1']
    #allocation5 [shape = 's32[1]{0}', space=sflag, size = 0x4, scoped, tag = 'scoped memory for tpu_custom_call.1']
    #allocation6 [shape = 'u8[262144]{0}', space=vmem, size = 0x40000, scoped, tag = 'input window, operand 3, single buffered']
    #allocation7 [shape = 's32[1]{0}', space=sflag, size = 0x4, scoped, tag = 'scoped memory for tpu_custom_call.1']
    #allocation8 [shape = 'u8[4096]{0}', space=vmem, size = 0x1000, scoped, tag = 'output window, operand 0, single buffered']
    %15 = vsyncpa [#allocation4], 0
    %16 = vsyncpa [#allocation7], 0
    %17 = vsyncpa [#allocation5], 0
    // Predicated region
    $region2: #{tpu_custom_call.1} parent=1 // pred_check
      _
    $region3: #{tpu_custom_call.1} parent=1 // pred_check_branch
      %19 = sbr.rel (0) target = $region5
    $region4: #{tpu_custom_call.1} parent=1 // pred_region
      %s21 = ssub.s32 128, 128
      %22 = vsyncadd [#allocation4], %s21
      %s24 = sshll.u32 [#allocation3], 4
      %s25 = int_to_ptr.vmem [resolvable:$true] %s24
      %27 = dma.hbm_to_vmem [thread:$0]  %s0, 128, %s25, [#allocation4]
    $region5: #{tpu_custom_call.1} parent=1 // pred_fallthru
      _
    // Predicated region
    $region6: #{tpu_custom_call.1} parent=1 // pred_check
      _
    $region7: #{tpu_custom_call.1} parent=1 // pred_check_branch
      %29 = sbr.rel (0) target = $region9
    $region8: #{tpu_custom_call.1} parent=1 // pred_region
      _
    $region9: #{tpu_custom_call.1} parent=1 // pred_fallthru
      _
    // Predicated region
    $region10: #{tpu_custom_call.1} parent=1 // pred_check
      _
    $region11: #{tpu_custom_call.1} parent=1 // pred_check_branch
      %31 = sbr.rel (0) target = $region13
    $region12: #{tpu_custom_call.1} parent=1 // pred_region
      _
    $region13: #{tpu_custom_call.1} parent=1 // pred_fallthru
      _
    // Predicated region
    $region14: #{tpu_custom_call.1} parent=1 // pred_check
      _
    $region15: #{tpu_custom_call.1} parent=1 // pred_check_branch
      %33 = sbr.rel (0) target = $region17
    $region16: #{tpu_custom_call.1} parent=1 // pred_region
      %s35 = ssub.s32 8192, 8192
      %36 = vsyncadd [#allocation7], %s35
      %s37 = sshll.u32 [#allocation6], 4
      %s38 = int_to_ptr.vmem [resolvable:$true] %s37
      %43 = dma.hbm_to_vmem [thread:$0]  %s3, 8192, %s38, [#allocation7], 512, 512, 32
    $region17: #{tpu_custom_call.1} parent=1 // pred_fallthru
      _
    // Predicated region
    $region18: #{tpu_custom_call.1} parent=1 // pred_check
      _
    $region19: #{tpu_custom_call.1} parent=1 // pred_check_branch
      %45 = sbr.rel (0) target = $region21
    $region20: #{tpu_custom_call.1} parent=1 // pred_region
      _
    $region21: #{tpu_custom_call.1} parent=1 // pred_fallthru
      _
    // Predicated region
    $region22: #{tpu_custom_call.1} parent=1 // pred_check
      _
    $region23: #{tpu_custom_call.1} parent=1 // pred_check_branch
      %47 = sbr.rel (0) target = $region25
    $region24: #{tpu_custom_call.1} parent=1 // pred_region
      _
    $region25: #{tpu_custom_call.1} parent=1 // pred_fallthru
      _
    // Predicated region
    $region26: #{tpu_custom_call.1} parent=1 // pred_check
      _
    $region27: #{tpu_custom_call.1} parent=1 // pred_check_branch
      %49 = sbr.rel (0) target = $region29
    $region28: #{tpu_custom_call.1} parent=1 // pred_region
      _
    $region29: #{tpu_custom_call.1} parent=1 // pred_fallthru
      _
    // Predicated region
    $region30: #{tpu_custom_call.1} parent=1 // pred_check
      _
    $region31: #{tpu_custom_call.1} parent=1 // pred_check_branch
      %51 = sbr.rel (0) target = $region33
    $region32: #{tpu_custom_call.1} parent=1 // pred_region
      _
    $region33: #{tpu_custom_call.1} parent=1 // pred_fallthru
      _
    // Predicated region
    $region34: #{tpu_custom_call.1} parent=1 // pred_check
      _
    $region35: #{tpu_custom_call.1} parent=1 // pred_check_branch
      %53 = sbr.rel (0) target = $region37
    $region36: #{tpu_custom_call.1} parent=1 // pred_region
      %54 = dma.done [#allocation4], 128
    $region37: #{tpu_custom_call.1} parent=1 // pred_fallthru
      _
    // Predicated region
    $region38: #{tpu_custom_call.1} parent=1 // pred_check
      _
    $region39: #{tpu_custom_call.1} parent=1 // pred_check_branch
      %56 = sbr.rel (0) target = $region41
    $region40: #{tpu_custom_call.1} parent=1 // pred_region
      %57 = dma.done [#allocation7], 8192
    $region41: #{tpu_custom_call.1} parent=1 // pred_fallthru
      _
    %v58 = vld [vmem:[#allocation3] sm:$0xff]
    %v59 = vld [vmem:[%s1] sm:$0xf]
    %v60 = vld [vmem:[%s2] sm:$0xf]
    %v61 = vld [vmem:[#allocation6] sm:$0xff]
    %v62 = vld [vmem:[#allocation6 + $0x8] sm:$0xff]
    %v63 = vld [vmem:[#allocation6 + $0x10] sm:$0xff]
    %v64 = vld [vmem:[#allocation6 + $0x18] sm:$0xff]
    %v65 = vld [vmem:[#allocation6 + $0x20] sm:$0xff]
    %v66 = vld [vmem:[#allocation6 + $0x28] sm:$0xff]
    %v67 = vld [vmem:[#allocation6 + $0x30] sm:$0xff]
    %v68 = vld [vmem:[#allocation6 + $0x38] sm:$0xff]
    %v69 = vld [vmem:[#allocation6 + $0x40] sm:$0xff]
    %v70 = vld [vmem:[#allocation6 + $0x48] sm:$0xff]
    %v71 = vld [vmem:[#allocation6 + $0x50] sm:$0xff]
    %v72 = vld [vmem:[#allocation6 + $0x58] sm:$0xff]
    %v73 = vld [vmem:[#allocation6 + $0x60] sm:$0xff]
    %v74 = vld [vmem:[#allocation6 + $0x68] sm:$0xff]
    %v75 = vld [vmem:[#allocation6 + $0x70] sm:$0xff]
    %v76 = vld [vmem:[#allocation6 + $0x78] sm:$0xff]
    %v77 = vld [vmem:[#allocation6 + $0x80] sm:$0xff]
    %v78 = vld [vmem:[#allocation6 + $0x88] sm:$0xff]
    %v79 = vld [vmem:[#allocation6 + $0x90] sm:$0xff]
    %v80 = vld [vmem:[#allocation6 + $0x98] sm:$0xff]
    %v81 = vld [vmem:[#allocation6 + $0xa0] sm:$0xff]
    %v82 = vld [vmem:[#allocation6 + $0xa8] sm:$0xff]
    %v83 = vld [vmem:[#allocation6 + $0xb0] sm:$0xff]
    %v84 = vld [vmem:[#allocation6 + $0xb8] sm:$0xff]
    %v85 = vld [vmem:[#allocation6 + $0xc0] sm:$0xff]
    %v86 = vld [vmem:[#allocation6 + $0xc8] sm:$0xff]
    %v87 = vld [vmem:[#allocation6 + $0xd0] sm:$0xff]
    %v88 = vld [vmem:[#allocation6 + $0xd8] sm:$0xff]
    %v89 = vld [vmem:[#allocation6 + $0xe0] sm:$0xff]
    %v90 = vld [vmem:[#allocation6 + $0xe8] sm:$0xff]
    %v91 = vld [vmem:[#allocation6 + $0xf0] sm:$0xff]
    %v92 = vld [vmem:[#allocation6 + $0xf8] sm:$0xff]
    %v93 = vld [vmem:[#allocation6 + $0x100] sm:$0xff]
    %v94 = vld [vmem:[#allocation6 + $0x108] sm:$0xff]
    %v95 = vld [vmem:[#allocation6 + $0x110] sm:$0xff]
    %v96 = vld [vmem:[#allocation6 + $0x118] sm:$0xff]
    %v97 = vld [vmem:[#allocation6 + $0x120] sm:$0xff]
    %v98 = vld [vmem:[#allocation6 + $0x128] sm:$0xff]
    %v99 = vld [vmem:[#allocation6 + $0x130] sm:$0xff]
    %v100 = vld [vmem:[#allocation6 + $0x138] sm:$0xff]
    %v101 = vld [vmem:[#allocation6 + $0x140] sm:$0xff]
    %v102 = vld [vmem:[#allocation6 + $0x148] sm:$0xff]
    %v103 = vld [vmem:[#allocation6 + $0x150] sm:$0xff]
    %v104 = vld [vmem:[#allocation6 + $0x158] sm:$0xff]
    %v105 = vld [vmem:[#allocation6 + $0x160] sm:$0xff]
    %v106 = vld [vmem:[#allocation6 + $0x168] sm:$0xff]
    %v107 = vld [vmem:[#allocation6 + $0x170] sm:$0xff]
    %v108 = vld [vmem:[#allocation6 + $0x178] sm:$0xff]
    %v109 = vld [vmem:[#allocation6 + $0x180] sm:$0xff]
    %v110 = vld [vmem:[#allocation6 + $0x188] sm:$0xff]
    %v111 = vld [vmem:[#allocation6 + $0x190] sm:$0xff]
    %v112 = vld [vmem:[#allocation6 + $0x198] sm:$0xff]
    %v113 = vld [vmem:[#allocation6 + $0x1a0] sm:$0xff]
    %v114 = vld [vmem:[#allocation6 + $0x1a8] sm:$0xff]
    %v115 = vld [vmem:[#allocation6 + $0x1b0] sm:$0xff]
    %v116 = vld [vmem:[#allocation6 + $0x1b8] sm:$0xff]
    %v117 = vld [vmem:[#allocation6 + $0x1c0] sm:$0xff]
    %v118 = vld [vmem:[#allocation6 + $0x1c8] sm:$0xff]
    %v119 = vld [vmem:[#allocation6 + $0x1d0] sm:$0xff]
    %v120 = vld [vmem:[#allocation6 + $0x1d8] sm:$0xff]
    %v121 = vld [vmem:[#allocation6 + $0x1e0] sm:$0xff]
    %v122 = vld [vmem:[#allocation6 + $0x1e8] sm:$0xff]
    %v123 = vld [vmem:[#allocation6 + $0x1f0] sm:$0xff]
    %v124 = vld [vmem:[#allocation6 + $0x1f8] sm:$0xff]
    %v125 = vld [vmem:[%s5] sm:$0x1]
    %v126 = vld [vmem:[%s6] sm:$0x1]
    %v127 = vld [vmem:[%s4] sm:$0xf]
    %v129 = vlaneseq
    %v130 = vshrl.u32 %v129, 7
    %v131 = vsub.s32 0, %v130
    %v132 = vrot.slane %v127, %v131
    %v133 = vlaneseq
    %v134 = vshrl.u32 %v133, 7
    %v135 = vsub.s32 1, %v134
    %v136 = vrot.slane %v127, %v135
    %v137 = vlaneseq
    %v138 = vshrl.u32 %v137, 7
    %v139 = vsub.s32 2, %v138
    %v140 = vrot.slane %v127, %v139
    %v141 = vlaneseq
    %v142 = vshrl.u32 %v141, 7
    %v143 = vsub.s32 3, %v142
    %v144 = vrot.slane %v127, %v143
    %150 = vset.pattern.permute.xlu0 0
    %151 = vperm.xlu0 %150, %v58
    %v152 = vpop.permute.xlu0 %151
    %v155 = vlaneseq
    %v156 = vshrl.u32 %v155, 7
    %v157 = vsub.s32 0, %v156
    %v158 = vrot.slane %v59, %v157
    %v159 = vlaneseq
    %v160 = vshrl.u32 %v159, 7
    %v161 = vsub.s32 1, %v160
    %v162 = vrot.slane %v59, %v161
    %v163 = vlaneseq
    %v164 = vshrl.u32 %v163, 7
    %v165 = vsub.s32 2, %v164
    %v166 = vrot.slane %v59, %v165
    %v167 = vlaneseq
    %v168 = vshrl.u32 %v167, 7
    %v169 = vsub.s32 3, %v168
    %v170 = vrot.slane %v59, %v169
    %v175 = vmul.f32 %v152, %v158
    %v176 = vmul.f32 %v152, %v162
    %v177 = vmul.f32 %v152, %v166
    %v178 = vmul.f32 %v152, %v170
    %179 = vmatprep.subr.mxu0 %v62
    %180 = vmatpush1.msra.mxu0 %v61
    %181 = vmatprep.subr.mxu0 %v66
    %182 = vmatpush1.msra.mxu0 %v65
    %183 = vmatprep.subr.mxu0 %v70
    %184 = vmatpush1.msra.mxu0 %v69
    %185 = vmatprep.subr.mxu0 %v74
    %186 = vmatpush1.msra.mxu0 %v73
    %187 = vmatprep.subr.mxu0 %v78
    %188 = vmatpush1.msra.mxu0 %v77
    %189 = vmatprep.subr.mxu0 %v82
    %190 = vmatpush1.msra.mxu0 %v81
    %191 = vmatprep.subr.mxu0 %v86
    %192 = vmatpush1.msra.mxu0 %v85
    %193 = vmatprep.subr.mxu0 %v90
    %194 = vmatpush1.msra.mxu0 %v89
    %195 = vmatprep.subr.mxu0 %v94
    %196 = vmatpush1.msra.mxu0 %v93
    %197 = vmatprep.subr.mxu0 %v98
    %198 = vmatpush1.msra.mxu0 %v97
    %199 = vmatprep.subr.mxu0 %v102
    %200 = vmatpush1.msra.mxu0 %v101
    %201 = vmatprep.subr.mxu0 %v106
    %202 = vmatpush1.msra.mxu0 %v105
    %203 = vmatprep.subr.mxu0 %v110
    %204 = vmatpush1.msra.mxu0 %v109
    %205 = vmatprep.subr.mxu0 %v114
    %206 = vmatpush1.msra.mxu0 %v113
    %207 = vmatprep.subr.mxu0 %v118
    %208 = vmatpush1.msra.mxu0 %v117
    %209 = vmatprep.subr.mxu0 %v122
    %210 = vmatpush1.msra.mxu0 %v121
    %211 = vmatprep.subr.mxu0 0.0
    %212 = vmatpush1.msra.mxu0 0.0
    %213 = vmatprep.subr.mxu0 0.0
    %214 = vmatpush1.msra.mxu0 0.0
    %215 = vmatprep.subr.mxu0 0.0
    %216 = vmatpush1.msra.mxu0 0.0
    %217 = vmatprep.subr.mxu0 0.0
    %218 = vmatpush1.msra.mxu0 0.0
    %219 = vmatprep.subr.mxu0 0.0
    %220 = vmatpush1.msra.mxu0 0.0
    %221 = vmatprep.subr.mxu0 0.0
    %222 = vmatpush1.msra.mxu0 0.0
    %223 = vmatprep.subr.mxu0 0.0
    %224 = vmatpush1.msra.mxu0 0.0
    %225 = vmatprep.subr.mxu0 0.0
    %226 = vmatpush1.msra.mxu0 0.0
    %227 = vmatprep.subr.mxu0 0.0
    %228 = vmatpush1.msra.mxu0 0.0
    %229 = vmatprep.subr.mxu0 0.0
    %230 = vmatpush1.msra.mxu0 0.0
    %231 = vmatprep.subr.mxu0 0.0
    %232 = vmatpush1.msra.mxu0 0.0
    %233 = vmatprep.subr.mxu0 0.0
    %234 = vmatpush1.msra.mxu0 0.0
    %235 = vmatprep.subr.mxu0 0.0
    %236 = vmatpush1.msra.mxu0 0.0
    %237 = vmatprep.subr.mxu0 0.0
    %238 = vmatpush1.msra.mxu0 0.0
    %239 = vmatprep.subr.mxu0 0.0
    %240 = vmatpush1.msra.mxu0 0.0
    %241 = vmatprep.subr.mxu0 0.0
    %242 = vmatpush1.msra.mxu0 0.0
    %243 = vmatprep.mubr.f32.mxu0 0.0
    %244 = vmatmul.mubr.f32.gmra.mrb[0].mxu0 0.0
    %v245 = vpop.f32.mrb[0].mxu0
    %v246 = vadd.f32 %v175, %v245
    %v247 = vpop.f32.mrb[0].mxu0
    %v248 = vadd.f32 %v176, %v247
    %249 = vdwg.mxu0
    %250 = vmatprep.subr.mxu0 %v64
    %251 = vmatpush1.msra.mxu0 %v63
    %252 = vmatprep.subr.mxu0 %v68
    %253 = vmatpush1.msra.mxu0 %v67
    %254 = vmatprep.subr.mxu0 %v72
    %255 = vmatpush1.msra.mxu0 %v71
    %256 = vmatprep.subr.mxu0 %v76
    %257 = vmatpush1.msra.mxu0 %v75
    %258 = vmatprep.subr.mxu0 %v80
    %259 = vmatpush1.msra.mxu0 %v79
    %260 = vmatprep.subr.mxu0 %v84
    %261 = vmatpush1.msra.mxu0 %v83
    %262 = vmatprep.subr.mxu0 %v88
    %263 = vmatpush1.msra.mxu0 %v87
    %264 = vmatprep.subr.mxu0 %v92
    %265 = vmatpush1.msra.mxu0 %v91
    %266 = vmatprep.subr.mxu0 %v96
    %267 = vmatpush1.msra.mxu0 %v95
    %268 = vmatprep.subr.mxu0 %v100
    %269 = vmatpush1.msra.mxu0 %v99
    %270 = vmatprep.subr.mxu0 %v104
    %271 = vmatpush1.msra.mxu0 %v103
    %272 = vmatprep.subr.mxu0 %v108
    %273 = vmatpush1.msra.mxu0 %v107
    %274 = vmatprep.subr.mxu0 %v112
    %275 = vmatpush1.msra.mxu0 %v111
    %276 = vmatprep.subr.mxu0 %v116
    %277 = vmatpush1.msra.mxu0 %v115
    %278 = vmatprep.subr.mxu0 %v120
    %279 = vmatpush1.msra.mxu0 %v119
    %280 = vmatprep.subr.mxu0 %v124
    %281 = vmatpush1.msra.mxu0 %v123
    %282 = vmatprep.subr.mxu0 0.0
    %283 = vmatpush1.msra.mxu0 0.0
    %284 = vmatprep.subr.mxu0 0.0
    %285 = vmatpush1.msra.mxu0 0.0
    %286 = vmatprep.subr.mxu0 0.0
    %287 = vmatpush1.msra.mxu0 0.0
    %288 = vmatprep.subr.mxu0 0.0
    %289 = vmatpush1.msra.mxu0 0.0
    %290 = vmatprep.subr.mxu0 0.0
    %291 = vmatpush1.msra.mxu0 0.0
    %292 = vmatprep.subr.mxu0 0.0
    %293 = vmatpush1.msra.mxu0 0.0
    %294 = vmatprep.subr.mxu0 0.0
    %295 = vmatpush1.msra.mxu0 0.0
    %296 = vmatprep.subr.mxu0 0.0
    %297 = vmatpush1.msra.mxu0 0.0
    %298 = vmatprep.subr.mxu0 0.0
    %299 = vmatpush1.msra.mxu0 0.0
    %300 = vmatprep.subr.mxu0 0.0
    %301 = vmatpush1.msra.mxu0 0.0
    %302 = vmatprep.subr.mxu0 0.0
    %303 = vmatpush1.msra.mxu0 0.0
    %304 = vmatprep.subr.mxu0 0.0
    %305 = vmatpush1.msra.mxu0 0.0
    %306 = vmatprep.subr.mxu0 0.0
    %307 = vmatpush1.msra.mxu0 0.0
    %308 = vmatprep.subr.mxu0 0.0
    %309 = vmatpush1.msra.mxu0 0.0
    %310 = vmatprep.subr.mxu0 0.0
    %311 = vmatpush1.msra.mxu0 0.0
    %312 = vmatprep.subr.mxu0 0.0
    %313 = vmatpush1.msra.mxu0 0.0
    %314 = vmatprep.mubr.f32.mxu0 0.0
    %315 = vmatmul.mubr.f32.gmra.mrb[0].mxu0 0.0
    %v316 = vpop.f32.mrb[0].mxu0
    %v317 = vadd.f32 %v177, %v316
    %v318 = vpop.f32.mrb[0].mxu0
    %v319 = vadd.f32 %v178, %v318
    %320 = vdwg.mxu0
    %321 = vset.pattern.permute.xlu0 7
    %322 = vperm.xlu0 %321, %v58
    %v323 = vpop.permute.xlu0 %322
    %v326 = vlaneseq
    %v327 = vshrl.u32 %v326, 7
    %v328 = vsub.s32 0, %v327
    %v329 = vrot.slane %v60, %v328
    %v330 = vlaneseq
    %v331 = vshrl.u32 %v330, 7
    %v332 = vsub.s32 1, %v331
    %v333 = vrot.slane %v60, %v332
    %v334 = vlaneseq
    %v335 = vshrl.u32 %v334, 7
    %v336 = vsub.s32 2, %v335
    %v337 = vrot.slane %v60, %v336
    %v338 = vlaneseq
    %v339 = vshrl.u32 %v338, 7
    %v340 = vsub.s32 3, %v339
    %v341 = vrot.slane %v60, %v340
    %v346 = vmul.f32 %v323, %v329
    %v347 = vmul.f32 %v323, %v333
    %v348 = vmul.f32 %v323, %v337
    %v349 = vmul.f32 %v323, %v341
    %v350 = vadd.f32 %v246, %v346
    %v351 = vadd.f32 %v248, %v347
    %v352 = vadd.f32 %v317, %v348
    %v353 = vadd.f32 %v319, %v349
    %v354 = vadd.f32 %v350, %v132
    %v355 = vadd.f32 %v351, %v136
    %v356 = vadd.f32 %v352, %v140
    %v357 = vadd.f32 %v353, %v144
    %v358 = vxor.u32 %v354, 2147483648
    %v359 = vmul.f32 %v358, 1.442695
    %v360 = vpow.pop %v359
    %v361 = vadd.f32 %v360, 1.0
    %v362 = vrcp.pop %v361
    %v363 = vmul.f32 1.0, %v362
    %v364 = vxor.u32 %v355, 2147483648
    %v365 = vmul.f32 %v364, 1.442695
    %v366 = vpow.pop %v365
    %v367 = vadd.f32 %v366, 1.0
    %v368 = vrcp.pop %v367
    %v369 = vmul.f32 1.0, %v368
    %v370 = vtanh.pop %v356
    %v371 = vxor.u32 %v357, 2147483648
    %v372 = vmul.f32 %v371, 1.442695
    %v373 = vpow.pop %v372
    %v374 = vadd.f32 %v373, 1.0
    %v375 = vrcp.pop %v374
    %v376 = vmul.f32 1.0, %v375
    %v377 = vmul.f32 %v369, 0.0
    %v378 = vmul.f32 %v363, %v370
    %v379 = vadd.f32 %v377, %v378
    %v380 = vtanh.pop %v379
    %v381 = vmul.f32 %v376, %v380
    %382 = vset.pattern.permute.xlu0 1
    %383 = vperm.xlu0 %382, %v58
    %v384 = vpop.permute.xlu0 %383
    %v386 = vmul.f32 %v384, %v158
    %v387 = vmul.f32 %v384, %v162
    %v388 = vmul.f32 %v384, %v166
    %v389 = vmul.f32 %v384, %v170
    %390 = vmatprep.subr.mxu0 %v62
    %391 = vmatpush1.msra.mxu0 %v61
    %392 = vmatprep.subr.mxu0 %v66
    %393 = vmatpush1.msra.mxu0 %v65
    %394 = vmatprep.subr.mxu0 %v70
    %395 = vmatpush1.msra.mxu0 %v69
    %396 = vmatprep.subr.mxu0 %v74
    %397 = vmatpush1.msra.mxu0 %v73
    %398 = vmatprep.subr.mxu0 %v78
    %399 = vmatpush1.msra.mxu0 %v77
    %400 = vmatprep.subr.mxu0 %v82
    %401 = vmatpush1.msra.mxu0 %v81
    %402 = vmatprep.subr.mxu0 %v86
    %403 = vmatpush1.msra.mxu0 %v85
    %404 = vmatprep.subr.mxu0 %v90
    %405 = vmatpush1.msra.mxu0 %v89
    %406 = vmatprep.subr.mxu0 %v94
    %407 = vmatpush1.msra.mxu0 %v93
    %408 = vmatprep.subr.mxu0 %v98
    %409 = vmatpush1.msra.mxu0 %v97
    %410 = vmatprep.subr.mxu0 %v102
    %411 = vmatpush1.msra.mxu0 %v101
    %412 = vmatprep.subr.mxu0 %v106
    %413 = vmatpush1.msra.mxu0 %v105
    %414 = vmatprep.subr.mxu0 %v110
    %415 = vmatpush1.msra.mxu0 %v109
    %416 = vmatprep.subr.mxu0 %v114
    %417 = vmatpush1.msra.mxu0 %v113
    %418 = vmatprep.subr.mxu0 %v118
    %419 = vmatpush1.msra.mxu0 %v117
    %420 = vmatprep.subr.mxu0 %v122
    %421 = vmatpush1.msra.mxu0 %v121
    %422 = vmatprep.subr.mxu0 0.0
    %423 = vmatpush1.msra.mxu0 0.0
    %424 = vmatprep.subr.mxu0 0.0
    %425 = vmatpush1.msra.mxu0 0.0
    %426 = vmatprep.subr.mxu0 0.0
    %427 = vmatpush1.msra.mxu0 0.0
    %428 = vmatprep.subr.mxu0 0.0
    %429 = vmatpush1.msra.mxu0 0.0
    %430 = vmatprep.subr.mxu0 0.0
    %431 = vmatpush1.msra.mxu0 0.0
    %432 = vmatprep.subr.mxu0 0.0
    %433 = vmatpush1.msra.mxu0 0.0
    %434 = vmatprep.subr.mxu0 0.0
    %435 = vmatpush1.msra.mxu0 0.0
    %436 = vmatprep.subr.mxu0 0.0
    %437 = vmatpush1.msra.mxu0 0.0
    %438 = vmatprep.subr.mxu0 0.0
    %439 = vmatpush1.msra.mxu0 0.0
    %440 = vmatprep.subr.mxu0 0.0
    %441 = vmatpush1.msra.mxu0 0.0
    %442 = vmatprep.subr.mxu0 0.0
    %443 = vmatpush1.msra.mxu0 0.0
    %444 = vmatprep.subr.mxu0 0.0
    %445 = vmatpush1.msra.mxu0 0.0
    %446 = vmatprep.subr.mxu0 0.0
    %447 = vmatpush1.msra.mxu0 0.0
    %448 = vmatprep.subr.mxu0 0.0
    %449 = vmatpush1.msra.mxu0 0.0
    %450 = vmatprep.subr.mxu0 0.0
    %451 = vmatpush1.msra.mxu0 0.0
    %452 = vmatprep.subr.mxu0 0.0
    %453 = vmatpush1.msra.mxu0 0.0
    %454 = vmatprep.mubr.f32.mxu0 0.0
    %455 = vmatmul.mubr.f32.gmra.mrb[0].mxu0 %v381
    %v456 = vpop.f32.mrb[0].mxu0
    %v457 = vadd.f32 %v386, %v456
    %v458 = vpop.f32.mrb[0].mxu0
    %v459 = vadd.f32 %v387, %v458
    %460 = vdwg.mxu0
    %461 = vmatprep.subr.mxu0 %v64
    %462 = vmatpush1.msra.mxu0 %v63
    %463 = vmatprep.subr.mxu0 %v68
    %464 = vmatpush1.msra.mxu0 %v67
    %465 = vmatprep.subr.mxu0 %v72
    %466 = vmatpush1.msra.mxu0 %v71
    %467 = vmatprep.subr.mxu0 %v76
    %468 = vmatpush1.msra.mxu0 %v75
    %469 = vmatprep.subr.mxu0 %v80
    %470 = vmatpush1.msra.mxu0 %v79
    %471 = vmatprep.subr.mxu0 %v84
    %472 = vmatpush1.msra.mxu0 %v83
    %473 = vmatprep.subr.mxu0 %v88
    %474 = vmatpush1.msra.mxu0 %v87
    %475 = vmatprep.subr.mxu0 %v92
    %476 = vmatpush1.msra.mxu0 %v91
    %477 = vmatprep.subr.mxu0 %v96
    %478 = vmatpush1.msra.mxu0 %v95
    %479 = vmatprep.subr.mxu0 %v100
    %480 = vmatpush1.msra.mxu0 %v99
    %481 = vmatprep.subr.mxu0 %v104
    %482 = vmatpush1.msra.mxu0 %v103
    %483 = vmatprep.subr.mxu0 %v108
    %484 = vmatpush1.msra.mxu0 %v107
    %485 = vmatprep.subr.mxu0 %v112
    %486 = vmatpush1.msra.mxu0 %v111
    %487 = vmatprep.subr.mxu0 %v116
    %488 = vmatpush1.msra.mxu0 %v115
    %489 = vmatprep.subr.mxu0 %v120
    %490 = vmatpush1.msra.mxu0 %v119
    %491 = vmatprep.subr.mxu0 %v124
    %492 = vmatpush1.msra.mxu0 %v123
    %493 = vmatprep.subr.mxu0 0.0
    %494 = vmatpush1.msra.mxu0 0.0
    %495 = vmatprep.subr.mxu0 0.0
    %496 = vmatpush1.msra.mxu0 0.0
    %497 = vmatprep.subr.mxu0 0.0
    %498 = vmatpush1.msra.mxu0 0.0
    %499 = vmatprep.subr.mxu0 0.0
    %500 = vmatpush1.msra.mxu0 0.0
    %501 = vmatprep.subr.mxu0 0.0
    %502 = vmatpush1.msra.mxu0 0.0
    %503 = vmatprep.subr.mxu0 0.0
    %504 = vmatpush1.msra.mxu0 0.0
    %505 = vmatprep.subr.mxu0 0.0
    %506 = vmatpush1.msra.mxu0 0.0
    %507 = vmatprep.subr.mxu0 0.0
    %508 = vmatpush1.msra.mxu0 0.0
    %509 = vmatprep.subr.mxu0 0.0
    %510 = vmatpush1.msra.mxu0 0.0
    %511 = vmatprep.subr.mxu0 0.0
    %512 = vmatpush1.msra.mxu0 0.0
    %513 = vmatprep.subr.mxu0 0.0
    %514 = vmatpush1.msra.mxu0 0.0
    %515 = vmatprep.subr.mxu0 0.0
    %516 = vmatpush1.msra.mxu0 0.0
    %517 = vmatprep.subr.mxu0 0.0
    %518 = vmatpush1.msra.mxu0 0.0
    %519 = vmatprep.subr.mxu0 0.0
    %520 = vmatpush1.msra.mxu0 0.0
    %521 = vmatprep.subr.mxu0 0.0
    %522 = vmatpush1.msra.mxu0 0.0
    %523 = vmatprep.subr.mxu0 0.0
    %524 = vmatpush1.msra.mxu0 0.0
    %525 = vmatprep.mubr.f32.mxu0 0.0
    %526 = vmatmul.mubr.f32.gmra.mrb[0].mxu0 %v381
    %v527 = vpop.f32.mrb[0].mxu0
    %v528 = vadd.f32 %v388, %v527
    %v529 = vpop.f32.mrb[0].mxu0
    %v530 = vadd.f32 %v389, %v529
    %531 = vdwg.mxu0
    %532 = vset.pattern.permute.xlu0 6
    %533 = vperm.xlu0 %532, %v58
    %v534 = vpop.permute.xlu0 %533
    %v536 = vmul.f32 %v534, %v329
    %v537 = vmul.f32 %v534, %v333
    %v538 = vmul.f32 %v534, %v337
    %v539 = vmul.f32 %v534, %v341
    %v540 = vadd.f32 %v457, %v536
    %v541 = vadd.f32 %v459, %v537
    %v542 = vadd.f32 %v528, %v538
    %v543 = vadd.f32 %v530, %v539
    %v544 = vadd.f32 %v540, %v132
    %v545 = vadd.f32 %v541, %v136
    %v546 = vadd.f32 %v542, %v140
    %v547 = vadd.f32 %v543, %v144
    %v548 = vxor.u32 %v544, 2147483648
    %v549 = vmul.f32 %v548, 1.442695
    %v550 = vpow.pop %v549
    %v551 = vadd.f32 %v550, 1.0
    %v552 = vrcp.pop %v551
    %v553 = vmul.f32 1.0, %v552
    %v554 = vxor.u32 %v545, 2147483648
    %v555 = vmul.f32 %v554, 1.442695
    %v556 = vpow.pop %v555
    %v557 = vadd.f32 %v556, 1.0
    %v558 = vrcp.pop %v557
    %v559 = vmul.f32 1.0, %v558
    %v560 = vtanh.pop %v546
    %v561 = vxor.u32 %v547, 2147483648
    %v562 = vmul.f32 %v561, 1.442695
    %v563 = vpow.pop %v562
    %v564 = vadd.f32 %v563, 1.0
    %v565 = vrcp.pop %v564
    %v566 = vmul.f32 1.0, %v565
    %v567 = vmul.f32 %v559, %v379
    %v568 = vmul.f32 %v553, %v560
    %v569 = vadd.f32 %v567, %v568
    %v570 = vtanh.pop %v569
    %v571 = vmul.f32 %v566, %v570
    %572 = vset.pattern.permute.xlu0 2
    %573 = vperm.xlu0 %572, %v58
    %v574 = vpop.permute.xlu0 %573
    %v576 = vmul.f32 %v574, %v158
    %v577 = vmul.f32 %v574, %v162
    %v578 = vmul.f32 %v574, %v166
    %v579 = vmul.f32 %v574, %v170
    %580 = vmatprep.subr.mxu0 %v62
    %581 = vmatpush1.msra.mxu0 %v61
    %582 = vmatprep.subr.mxu0 %v66
    %583 = vmatpush1.msra.mxu0 %v65
    %584 = vmatprep.subr.mxu0 %v70
    %585 = vmatpush1.msra.mxu0 %v69
    %586 = vmatprep.subr.mxu0 %v74
    %587 = vmatpush1.msra.mxu0 %v73
    %588 = vmatprep.subr.mxu0 %v78
    %589 = vmatpush1.msra.mxu0 %v77
    %590 = vmatprep.subr.mxu0 %v82
    %591 = vmatpush1.msra.mxu0 %v81
    %592 = vmatprep.subr.mxu0 %v86
    %593 = vmatpush1.msra.mxu0 %v85
    %594 = vmatprep.subr.mxu0 %v90
    %595 = vmatpush1.msra.mxu0 %v89
    %596 = vmatprep.subr.mxu0 %v94
    %597 = vmatpush1.msra.mxu0 %v93
    %598 = vmatprep.subr.mxu0 %v98
    %599 = vmatpush1.msra.mxu0 %v97
    %600 = vmatprep.subr.mxu0 %v102
    %601 = vmatpush1.msra.mxu0 %v101
    %602 = vmatprep.subr.mxu0 %v106
    %603 = vmatpush1.msra.mxu0 %v105
    %604 = vmatprep.subr.mxu0 %v110
    %605 = vmatpush1.msra.mxu0 %v109
    %606 = vmatprep.subr.mxu0 %v114
    %607 = vmatpush1.msra.mxu0 %v113
    %608 = vmatprep.subr.mxu0 %v118
    %609 = vmatpush1.msra.mxu0 %v117
    %610 = vmatprep.subr.mxu0 %v122
    %611 = vmatpush1.msra.mxu0 %v121
    %612 = vmatprep.subr.mxu0 0.0
    %613 = vmatpush1.msra.mxu0 0.0
    %614 = vmatprep.subr.mxu0 0.0
    %615 = vmatpush1.msra.mxu0 0.0
    %616 = vmatprep.subr.mxu0 0.0
    %617 = vmatpush1.msra.mxu0 0.0
    %618 = vmatprep.subr.mxu0 0.0
    %619 = vmatpush1.msra.mxu0 0.0
    %620 = vmatprep.subr.mxu0 0.0
    %621 = vmatpush1.msra.mxu0 0.0
    %622 = vmatprep.subr.mxu0 0.0
    %623 = vmatpush1.msra.mxu0 0.0
    %624 = vmatprep.subr.mxu0 0.0
    %625 = vmatpush1.msra.mxu0 0.0
    %626 = vmatprep.subr.mxu0 0.0
    %627 = vmatpush1.msra.mxu0 0.0
    %628 = vmatprep.subr.mxu0 0.0
    %629 = vmatpush1.msra.mxu0 0.0
    %630 = vmatprep.subr.mxu0 0.0
    %631 = vmatpush1.msra.mxu0 0.0
    %632 = vmatprep.subr.mxu0 0.0
    %633 = vmatpush1.msra.mxu0 0.0
    %634 = vmatprep.subr.mxu0 0.0
    %635 = vmatpush1.msra.mxu0 0.0
    %636 = vmatprep.subr.mxu0 0.0
    %637 = vmatpush1.msra.mxu0 0.0
    %638 = vmatprep.subr.mxu0 0.0
    %639 = vmatpush1.msra.mxu0 0.0
    %640 = vmatprep.subr.mxu0 0.0
    %641 = vmatpush1.msra.mxu0 0.0
    %642 = vmatprep.subr.mxu0 0.0
    %643 = vmatpush1.msra.mxu0 0.0
    %644 = vmatprep.mubr.f32.mxu0 0.0
    %645 = vmatmul.mubr.f32.gmra.mrb[0].mxu0 %v571
    %v646 = vpop.f32.mrb[0].mxu0
    %v647 = vadd.f32 %v576, %v646
    %v648 = vpop.f32.mrb[0].mxu0
    %v649 = vadd.f32 %v577, %v648
    %650 = vdwg.mxu0
    %651 = vmatprep.subr.mxu0 %v64
    %652 = vmatpush1.msra.mxu0 %v63
    %653 = vmatprep.subr.mxu0 %v68
    %654 = vmatpush1.msra.mxu0 %v67
    %655 = vmatprep.subr.mxu0 %v72
    %656 = vmatpush1.msra.mxu0 %v71
    %657 = vmatprep.subr.mxu0 %v76
    %658 = vmatpush1.msra.mxu0 %v75
    %659 = vmatprep.subr.mxu0 %v80
    %660 = vmatpush1.msra.mxu0 %v79
    %661 = vmatprep.subr.mxu0 %v84
    %662 = vmatpush1.msra.mxu0 %v83
    %663 = vmatprep.subr.mxu0 %v88
    %664 = vmatpush1.msra.mxu0 %v87
    %665 = vmatprep.subr.mxu0 %v92
    %666 = vmatpush1.msra.mxu0 %v91
    %667 = vmatprep.subr.mxu0 %v96
    %668 = vmatpush1.msra.mxu0 %v95
    %669 = vmatprep.subr.mxu0 %v100
    %670 = vmatpush1.msra.mxu0 %v99
    %671 = vmatprep.subr.mxu0 %v104
    %672 = vmatpush1.msra.mxu0 %v103
    %673 = vmatprep.subr.mxu0 %v108
    %674 = vmatpush1.msra.mxu0 %v107
    %675 = vmatprep.subr.mxu0 %v112
    %676 = vmatpush1.msra.mxu0 %v111
    %677 = vmatprep.subr.mxu0 %v116
    %678 = vmatpush1.msra.mxu0 %v115
    %679 = vmatprep.subr.mxu0 %v120
    %680 = vmatpush1.msra.mxu0 %v119
    %681 = vmatprep.subr.mxu0 %v124
    %682 = vmatpush1.msra.mxu0 %v123
    %683 = vmatprep.subr.mxu0 0.0
    %684 = vmatpush1.msra.mxu0 0.0
    %685 = vmatprep.subr.mxu0 0.0
    %686 = vmatpush1.msra.mxu0 0.0
    %687 = vmatprep.subr.mxu0 0.0
    %688 = vmatpush1.msra.mxu0 0.0
    %689 = vmatprep.subr.mxu0 0.0
    %690 = vmatpush1.msra.mxu0 0.0
    %691 = vmatprep.subr.mxu0 0.0
    %692 = vmatpush1.msra.mxu0 0.0
    %693 = vmatprep.subr.mxu0 0.0
    %694 = vmatpush1.msra.mxu0 0.0
    %695 = vmatprep.subr.mxu0 0.0
    %696 = vmatpush1.msra.mxu0 0.0
    %697 = vmatprep.subr.mxu0 0.0
    %698 = vmatpush1.msra.mxu0 0.0
    %699 = vmatprep.subr.mxu0 0.0
    %700 = vmatpush1.msra.mxu0 0.0
    %701 = vmatprep.subr.mxu0 0.0
    %702 = vmatpush1.msra.mxu0 0.0
    %703 = vmatprep.subr.mxu0 0.0
    %704 = vmatpush1.msra.mxu0 0.0
    %705 = vmatprep.subr.mxu0 0.0
    %706 = vmatpush1.msra.mxu0 0.0
    %707 = vmatprep.subr.mxu0 0.0
    %708 = vmatpush1.msra.mxu0 0.0
    %709 = vmatprep.subr.mxu0 0.0
    %710 = vmatpush1.msra.mxu0 0.0
    %711 = vmatprep.subr.mxu0 0.0
    %712 = vmatpush1.msra.mxu0 0.0
    %713 = vmatprep.subr.mxu0 0.0
    %714 = vmatpush1.msra.mxu0 0.0
    %715 = vmatprep.mubr.f32.mxu0 0.0
    %716 = vmatmul.mubr.f32.gmra.mrb[0].mxu0 %v571
    %v717 = vpop.f32.mrb[0].mxu0
    %v718 = vadd.f32 %v578, %v717
    %v719 = vpop.f32.mrb[0].mxu0
    %v720 = vadd.f32 %v579, %v719
    %721 = vdwg.mxu0
    %722 = vset.pattern.permute.xlu0 5
    %723 = vperm.xlu0 %722, %v58
    %v724 = vpop.permute.xlu0 %723
    %v726 = vmul.f32 %v724, %v329
    %v727 = vmul.f32 %v724, %v333
    %v728 = vmul.f32 %v724, %v337
    %v729 = vmul.f32 %v724, %v341
    %v730 = vadd.f32 %v647, %v726
    %v731 = vadd.f32 %v649, %v727
    %v732 = vadd.f32 %v718, %v728
    %v733 = vadd.f32 %v720, %v729
    %v734 = vadd.f32 %v730, %v132
    %v735 = vadd.f32 %v731, %v136
    %v736 = vadd.f32 %v732, %v140
    %v737 = vadd.f32 %v733, %v144
    %v738 = vxor.u32 %v734, 2147483648
    %v739 = vmul.f32 %v738, 1.442695
    %v740 = vpow.pop %v739
    %v741 = vadd.f32 %v740, 1.0
    %v742 = vrcp.pop %v741
    %v743 = vmul.f32 1.0, %v742
    %v744 = vxor.u32 %v735, 2147483648
    %v745 = vmul.f32 %v744, 1.442695
    %v746 = vpow.pop %v745
    %v747 = vadd.f32 %v746, 1.0
    %v748 = vrcp.pop %v747
    %v749 = vmul.f32 1.0, %v748
    %v750 = vtanh.pop %v736
    %v751 = vxor.u32 %v737, 2147483648
    %v752 = vmul.f32 %v751, 1.442695
    %v753 = vpow.pop %v752
    %v754 = vadd.f32 %v753, 1.0
    %v755 = vrcp.pop %v754
    %v756 = vmul.f32 1.0, %v755
    %v757 = vmul.f32 %v749, %v569
    %v758 = vmul.f32 %v743, %v750
    %v759 = vadd.f32 %v757, %v758
    %v760 = vtanh.pop %v759
    %v761 = vmul.f32 %v756, %v760
    %762 = vset.pattern.permute.xlu0 3
    %763 = vperm.xlu0 %762, %v58
    %v764 = vpop.permute.xlu0 %763
    %v766 = vmul.f32 %v764, %v158
    %v767 = vmul.f32 %v764, %v162
    %v768 = vmul.f32 %v764, %v166
    %v769 = vmul.f32 %v764, %v170
    %770 = vmatprep.subr.mxu0 %v62
    %771 = vmatpush1.msra.mxu0 %v61
    %772 = vmatprep.subr.mxu0 %v66
    %773 = vmatpush1.msra.mxu0 %v65
    %774 = vmatprep.subr.mxu0 %v70
    %775 = vmatpush1.msra.mxu0 %v69
    %776 = vmatprep.subr.mxu0 %v74
    %777 = vmatpush1.msra.mxu0 %v73
    %778 = vmatprep.subr.mxu0 %v78
    %779 = vmatpush1.msra.mxu0 %v77
    %780 = vmatprep.subr.mxu0 %v82
    %781 = vmatpush1.msra.mxu0 %v81
    %782 = vmatprep.subr.mxu0 %v86
    %783 = vmatpush1.msra.mxu0 %v85
    %784 = vmatprep.subr.mxu0 %v90
    %785 = vmatpush1.msra.mxu0 %v89
    %786 = vmatprep.subr.mxu0 %v94
    %787 = vmatpush1.msra.mxu0 %v93
    %788 = vmatprep.subr.mxu0 %v98
    %789 = vmatpush1.msra.mxu0 %v97
    %790 = vmatprep.subr.mxu0 %v102
    %791 = vmatpush1.msra.mxu0 %v101
    %792 = vmatprep.subr.mxu0 %v106
    %793 = vmatpush1.msra.mxu0 %v105
    %794 = vmatprep.subr.mxu0 %v110
    %795 = vmatpush1.msra.mxu0 %v109
    %796 = vmatprep.subr.mxu0 %v114
    %797 = vmatpush1.msra.mxu0 %v113
    %798 = vmatprep.subr.mxu0 %v118
    %799 = vmatpush1.msra.mxu0 %v117
    %800 = vmatprep.subr.mxu0 %v122
    %801 = vmatpush1.msra.mxu0 %v121
    %802 = vmatprep.subr.mxu0 0.0
    %803 = vmatpush1.msra.mxu0 0.0
    %804 = vmatprep.subr.mxu0 0.0
    %805 = vmatpush1.msra.mxu0 0.0
    %806 = vmatprep.subr.mxu0 0.0
    %807 = vmatpush1.msra.mxu0 0.0
    %808 = vmatprep.subr.mxu0 0.0
    %809 = vmatpush1.msra.mxu0 0.0
    %810 = vmatprep.subr.mxu0 0.0
    %811 = vmatpush1.msra.mxu0 0.0
    %812 = vmatprep.subr.mxu0 0.0
    %813 = vmatpush1.msra.mxu0 0.0
    %814 = vmatprep.subr.mxu0 0.0
    %815 = vmatpush1.msra.mxu0 0.0
    %816 = vmatprep.subr.mxu0 0.0
    %817 = vmatpush1.msra.mxu0 0.0
    %818 = vmatprep.subr.mxu0 0.0
    %819 = vmatpush1.msra.mxu0 0.0
    %820 = vmatprep.subr.mxu0 0.0
    %821 = vmatpush1.msra.mxu0 0.0
    %822 = vmatprep.subr.mxu0 0.0
    %823 = vmatpush1.msra.mxu0 0.0
    %824 = vmatprep.subr.mxu0 0.0
    %825 = vmatpush1.msra.mxu0 0.0
    %826 = vmatprep.subr.mxu0 0.0
    %827 = vmatpush1.msra.mxu0 0.0
    %828 = vmatprep.subr.mxu0 0.0
    %829 = vmatpush1.msra.mxu0 0.0
    %830 = vmatprep.subr.mxu0 0.0
    %831 = vmatpush1.msra.mxu0 0.0
    %832 = vmatprep.subr.mxu0 0.0
    %833 = vmatpush1.msra.mxu0 0.0
    %834 = vmatprep.mubr.f32.mxu0 0.0
    %835 = vmatmul.mubr.f32.gmra.mrb[0].mxu0 %v761
    %v836 = vpop.f32.mrb[0].mxu0
    %v837 = vadd.f32 %v766, %v836
    %v838 = vpop.f32.mrb[0].mxu0
    %v839 = vadd.f32 %v767, %v838
    %840 = vdwg.mxu0
    %841 = vmatprep.subr.mxu0 %v64
    %842 = vmatpush1.msra.mxu0 %v63
    %843 = vmatprep.subr.mxu0 %v68
    %844 = vmatpush1.msra.mxu0 %v67
    %845 = vmatprep.subr.mxu0 %v72
    %846 = vmatpush1.msra.mxu0 %v71
    %847 = vmatprep.subr.mxu0 %v76
    %848 = vmatpush1.msra.mxu0 %v75
    %849 = vmatprep.subr.mxu0 %v80
    %850 = vmatpush1.msra.mxu0 %v79
    %851 = vmatprep.subr.mxu0 %v84
    %852 = vmatpush1.msra.mxu0 %v83
    %853 = vmatprep.subr.mxu0 %v88
    %854 = vmatpush1.msra.mxu0 %v87
    %855 = vmatprep.subr.mxu0 %v92
    %856 = vmatpush1.msra.mxu0 %v91
    %857 = vmatprep.subr.mxu0 %v96
    %858 = vmatpush1.msra.mxu0 %v95
    %859 = vmatprep.subr.mxu0 %v100
    %860 = vmatpush1.msra.mxu0 %v99
    %861 = vmatprep.subr.mxu0 %v104
    %862 = vmatpush1.msra.mxu0 %v103
    %863 = vmatprep.subr.mxu0 %v108
    %864 = vmatpush1.msra.mxu0 %v107
    %865 = vmatprep.subr.mxu0 %v112
    %866 = vmatpush1.msra.mxu0 %v111
    %867 = vmatprep.subr.mxu0 %v116
    %868 = vmatpush1.msra.mxu0 %v115
    %869 = vmatprep.subr.mxu0 %v120
    %870 = vmatpush1.msra.mxu0 %v119
    %871 = vmatprep.subr.mxu0 %v124
    %872 = vmatpush1.msra.mxu0 %v123
    %873 = vmatprep.subr.mxu0 0.0
    %874 = vmatpush1.msra.mxu0 0.0
    %875 = vmatprep.subr.mxu0 0.0
    %876 = vmatpush1.msra.mxu0 0.0
    %877 = vmatprep.subr.mxu0 0.0
    %878 = vmatpush1.msra.mxu0 0.0
    %879 = vmatprep.subr.mxu0 0.0
    %880 = vmatpush1.msra.mxu0 0.0
    %881 = vmatprep.subr.mxu0 0.0
    %882 = vmatpush1.msra.mxu0 0.0
    %883 = vmatprep.subr.mxu0 0.0
    %884 = vmatpush1.msra.mxu0 0.0
    %885 = vmatprep.subr.mxu0 0.0
    %886 = vmatpush1.msra.mxu0 0.0
    %887 = vmatprep.subr.mxu0 0.0
    %888 = vmatpush1.msra.mxu0 0.0
    %889 = vmatprep.subr.mxu0 0.0
    %890 = vmatpush1.msra.mxu0 0.0
    %891 = vmatprep.subr.mxu0 0.0
    %892 = vmatpush1.msra.mxu0 0.0
    %893 = vmatprep.subr.mxu0 0.0
    %894 = vmatpush1.msra.mxu0 0.0
    %895 = vmatprep.subr.mxu0 0.0
    %896 = vmatpush1.msra.mxu0 0.0
    %897 = vmatprep.subr.mxu0 0.0
    %898 = vmatpush1.msra.mxu0 0.0
    %899 = vmatprep.subr.mxu0 0.0
    %900 = vmatpush1.msra.mxu0 0.0
    %901 = vmatprep.subr.mxu0 0.0
    %902 = vmatpush1.msra.mxu0 0.0
    %903 = vmatprep.subr.mxu0 0.0
    %904 = vmatpush1.msra.mxu0 0.0
    %905 = vmatprep.mubr.f32.mxu0 0.0
    %906 = vmatmul.mubr.f32.gmra.mrb[0].mxu0 %v761
    %v907 = vpop.f32.mrb[0].mxu0
    %v908 = vadd.f32 %v768, %v907
    %v909 = vpop.f32.mrb[0].mxu0
    %v910 = vadd.f32 %v769, %v909
    %911 = vdwg.mxu0
    %912 = vset.pattern.permute.xlu0 4
    %913 = vperm.xlu0 %912, %v58
    %v914 = vpop.permute.xlu0 %913
    %v916 = vmul.f32 %v914, %v329
    %v917 = vmul.f32 %v914, %v333
    %v918 = vmul.f32 %v914, %v337
    %v919 = vmul.f32 %v914, %v341
    %v920 = vadd.f32 %v837, %v916
    %v921 = vadd.f32 %v839, %v917
    %v922 = vadd.f32 %v908, %v918
    %v923 = vadd.f32 %v910, %v919
    %v924 = vadd.f32 %v920, %v132
    %v925 = vadd.f32 %v921, %v136
    %v926 = vadd.f32 %v922, %v140
    %v927 = vadd.f32 %v923, %v144
    %v928 = vxor.u32 %v924, 2147483648
    %v929 = vmul.f32 %v928, 1.442695
    %v930 = vpow.pop %v929
    %v931 = vadd.f32 %v930, 1.0
    %v932 = vrcp.pop %v931
    %v933 = vmul.f32 1.0, %v932
    %v934 = vxor.u32 %v925, 2147483648
    %v935 = vmul.f32 %v934, 1.442695
    %v936 = vpow.pop %v935
    %v937 = vadd.f32 %v936, 1.0
    %v938 = vrcp.pop %v937
    %v939 = vmul.f32 1.0, %v938
    %v940 = vtanh.pop %v926
    %v941 = vxor.u32 %v927, 2147483648
    %v942 = vmul.f32 %v941, 1.442695
    %v943 = vpow.pop %v942
    %v944 = vadd.f32 %v943, 1.0
    %v945 = vrcp.pop %v944
    %v946 = vmul.f32 1.0, %v945
    %v947 = vmul.f32 %v939, %v759
    %v948 = vmul.f32 %v933, %v940
    %v949 = vadd.f32 %v947, %v948
    %v950 = vtanh.pop %v949
    %v951 = vmul.f32 %v946, %v950
    %v952 = vmul.f32 %v914, %v158
    %v953 = vmul.f32 %v914, %v162
    %v954 = vmul.f32 %v914, %v166
    %v955 = vmul.f32 %v914, %v170
    %956 = vmatprep.subr.mxu0 %v62
    %957 = vmatpush1.msra.mxu0 %v61
    %958 = vmatprep.subr.mxu0 %v66
    %959 = vmatpush1.msra.mxu0 %v65
    %960 = vmatprep.subr.mxu0 %v70
    %961 = vmatpush1.msra.mxu0 %v69
    %962 = vmatprep.subr.mxu0 %v74
    %963 = vmatpush1.msra.mxu0 %v73
    %964 = vmatprep.subr.mxu0 %v78
    %965 = vmatpush1.msra.mxu0 %v77
    %966 = vmatprep.subr.mxu0 %v82
    %967 = vmatpush1.msra.mxu0 %v81
    %968 = vmatprep.subr.mxu0 %v86
    %969 = vmatpush1.msra.mxu0 %v85
    %970 = vmatprep.subr.mxu0 %v90
    %971 = vmatpush1.msra.mxu0 %v89
    %972 = vmatprep.subr.mxu0 %v94
    %973 = vmatpush1.msra.mxu0 %v93
    %974 = vmatprep.subr.mxu0 %v98
    %975 = vmatpush1.msra.mxu0 %v97
    %976 = vmatprep.subr.mxu0 %v102
    %977 = vmatpush1.msra.mxu0 %v101
    %978 = vmatprep.subr.mxu0 %v106
    %979 = vmatpush1.msra.mxu0 %v105
    %980 = vmatprep.subr.mxu0 %v110
    %981 = vmatpush1.msra.mxu0 %v109
    %982 = vmatprep.subr.mxu0 %v114
    %983 = vmatpush1.msra.mxu0 %v113
    %984 = vmatprep.subr.mxu0 %v118
    %985 = vmatpush1.msra.mxu0 %v117
    %986 = vmatprep.subr.mxu0 %v122
    %987 = vmatpush1.msra.mxu0 %v121
    %988 = vmatprep.subr.mxu0 0.0
    %989 = vmatpush1.msra.mxu0 0.0
    %990 = vmatprep.subr.mxu0 0.0
    %991 = vmatpush1.msra.mxu0 0.0
    %992 = vmatprep.subr.mxu0 0.0
    %993 = vmatpush1.msra.mxu0 0.0
    %994 = vmatprep.subr.mxu0 0.0
    %995 = vmatpush1.msra.mxu0 0.0
    %996 = vmatprep.subr.mxu0 0.0
    %997 = vmatpush1.msra.mxu0 0.0
    %998 = vmatprep.subr.mxu0 0.0
    %999 = vmatpush1.msra.mxu0 0.0
    %1000 = vmatprep.subr.mxu0 0.0
    %1001 = vmatpush1.msra.mxu0 0.0
    %1002 = vmatprep.subr.mxu0 0.0
    %1003 = vmatpush1.msra.mxu0 0.0
    %1004 = vmatprep.subr.mxu0 0.0
    %1005 = vmatpush1.msra.mxu0 0.0
    %1006 = vmatprep.subr.mxu0 0.0
    %1007 = vmatpush1.msra.mxu0 0.0
    %1008 = vmatprep.subr.mxu0 0.0
    %1009 = vmatpush1.msra.mxu0 0.0
    %1010 = vmatprep.subr.mxu0 0.0
    %1011 = vmatpush1.msra.mxu0 0.0
    %1012 = vmatprep.subr.mxu0 0.0
    %1013 = vmatpush1.msra.mxu0 0.0
    %1014 = vmatprep.subr.mxu0 0.0
    %1015 = vmatpush1.msra.mxu0 0.0
    %1016 = vmatprep.subr.mxu0 0.0
    %1017 = vmatpush1.msra.mxu0 0.0
    %1018 = vmatprep.subr.mxu0 0.0
    %1019 = vmatpush1.msra.mxu0 0.0
    %1020 = vmatprep.mubr.f32.mxu0 0.0
    %1021 = vmatmul.mubr.f32.gmra.mrb[0].mxu0 %v951
    %v1022 = vpop.f32.mrb[0].mxu0
    %v1023 = vadd.f32 %v952, %v1022
    %v1024 = vpop.f32.mrb[0].mxu0
    %v1025 = vadd.f32 %v953, %v1024
    %1026 = vdwg.mxu0
    %1027 = vmatprep.subr.mxu0 %v64
    %1028 = vmatpush1.msra.mxu0 %v63
    %1029 = vmatprep.subr.mxu0 %v68
    %1030 = vmatpush1.msra.mxu0 %v67
    %1031 = vmatprep.subr.mxu0 %v72
    %1032 = vmatpush1.msra.mxu0 %v71
    %1033 = vmatprep.subr.mxu0 %v76
    %1034 = vmatpush1.msra.mxu0 %v75
    %1035 = vmatprep.subr.mxu0 %v80
    %1036 = vmatpush1.msra.mxu0 %v79
    %1037 = vmatprep.subr.mxu0 %v84
    %1038 = vmatpush1.msra.mxu0 %v83
    %1039 = vmatprep.subr.mxu0 %v88
    %1040 = vmatpush1.msra.mxu0 %v87
    %1041 = vmatprep.subr.mxu0 %v92
    %1042 = vmatpush1.msra.mxu0 %v91
    %1043 = vmatprep.subr.mxu0 %v96
    %1044 = vmatpush1.msra.mxu0 %v95
    %1045 = vmatprep.subr.mxu0 %v100
    %1046 = vmatpush1.msra.mxu0 %v99
    %1047 = vmatprep.subr.mxu0 %v104
    %1048 = vmatpush1.msra.mxu0 %v103
    %1049 = vmatprep.subr.mxu0 %v108
    %1050 = vmatpush1.msra.mxu0 %v107
    %1051 = vmatprep.subr.mxu0 %v112
    %1052 = vmatpush1.msra.mxu0 %v111
    %1053 = vmatprep.subr.mxu0 %v116
    %1054 = vmatpush1.msra.mxu0 %v115
    %1055 = vmatprep.subr.mxu0 %v120
    %1056 = vmatpush1.msra.mxu0 %v119
    %1057 = vmatprep.subr.mxu0 %v124
    %1058 = vmatpush1.msra.mxu0 %v123
    %1059 = vmatprep.subr.mxu0 0.0
    %1060 = vmatpush1.msra.mxu0 0.0
    %1061 = vmatprep.subr.mxu0 0.0
    %1062 = vmatpush1.msra.mxu0 0.0
    %1063 = vmatprep.subr.mxu0 0.0
    %1064 = vmatpush1.msra.mxu0 0.0
    %1065 = vmatprep.subr.mxu0 0.0
    %1066 = vmatpush1.msra.mxu0 0.0
    %1067 = vmatprep.subr.mxu0 0.0
    %1068 = vmatpush1.msra.mxu0 0.0
    %1069 = vmatprep.subr.mxu0 0.0
    %1070 = vmatpush1.msra.mxu0 0.0
    %1071 = vmatprep.subr.mxu0 0.0
    %1072 = vmatpush1.msra.mxu0 0.0
    %1073 = vmatprep.subr.mxu0 0.0
    %1074 = vmatpush1.msra.mxu0 0.0
    %1075 = vmatprep.subr.mxu0 0.0
    %1076 = vmatpush1.msra.mxu0 0.0
    %1077 = vmatprep.subr.mxu0 0.0
    %1078 = vmatpush1.msra.mxu0 0.0
    %1079 = vmatprep.subr.mxu0 0.0
    %1080 = vmatpush1.msra.mxu0 0.0
    %1081 = vmatprep.subr.mxu0 0.0
    %1082 = vmatpush1.msra.mxu0 0.0
    %1083 = vmatprep.subr.mxu0 0.0
    %1084 = vmatpush1.msra.mxu0 0.0
    %1085 = vmatprep.subr.mxu0 0.0
    %1086 = vmatpush1.msra.mxu0 0.0
    %1087 = vmatprep.subr.mxu0 0.0
    %1088 = vmatpush1.msra.mxu0 0.0
    %1089 = vmatprep.subr.mxu0 0.0
    %1090 = vmatpush1.msra.mxu0 0.0
    %1091 = vmatprep.mubr.f32.mxu0 0.0
    %1092 = vmatmul.mubr.f32.gmra.mrb[0].mxu0 %v951
    %v1093 = vpop.f32.mrb[0].mxu0
    %v1094 = vadd.f32 %v954, %v1093
    %v1095 = vpop.f32.mrb[0].mxu0
    %v1096 = vadd.f32 %v955, %v1095
    %1097 = vdwg.mxu0
    %v1098 = vmul.f32 %v764, %v329
    %v1099 = vmul.f32 %v764, %v333
    %v1100 = vmul.f32 %v764, %v337
    %v1101 = vmul.f32 %v764, %v341
    %v1102 = vadd.f32 %v1023, %v1098
    %v1103 = vadd.f32 %v1025, %v1099
    %v1104 = vadd.f32 %v1094, %v1100
    %v1105 = vadd.f32 %v1096, %v1101
    %v1106 = vadd.f32 %v1102, %v132
    %v1107 = vadd.f32 %v1103, %v136
    %v1108 = vadd.f32 %v1104, %v140
    %v1109 = vadd.f32 %v1105, %v144
    %v1110 = vxor.u32 %v1106, 2147483648
    %v1111 = vmul.f32 %v1110, 1.442695
    %v1112 = vpow.pop %v1111
    %v1113 = vadd.f32 %v1112, 1.0
    %v1114 = vrcp.pop %v1113
    %v1115 = vmul.f32 1.0, %v1114
    %v1116 = vxor.u32 %v1107, 2147483648
    %v1117 = vmul.f32 %v1116, 1.442695
    %v1118 = vpow.pop %v1117
    %v1119 = vadd.f32 %v1118, 1.0
    %v1120 = vrcp.pop %v1119
    %v1121 = vmul.f32 1.0, %v1120
    %v1122 = vtanh.pop %v1108
    %v1123 = vxor.u32 %v1109, 2147483648
    %v1124 = vmul.f32 %v1123, 1.442695
    %v1125 = vpow.pop %v1124
    %v1126 = vadd.f32 %v1125, 1.0
    %v1127 = vrcp.pop %v1126
    %v1128 = vmul.f32 1.0, %v1127
    %v1129 = vmul.f32 %v1121, %v949
    %v1130 = vmul.f32 %v1115, %v1122
    %v1131 = vadd.f32 %v1129, %v1130
    %v1132 = vtanh.pop %v1131
    %v1133 = vmul.f32 %v1128, %v1132
    %v1134 = vmul.f32 %v724, %v158
    %v1135 = vmul.f32 %v724, %v162
    %v1136 = vmul.f32 %v724, %v166
    %v1137 = vmul.f32 %v724, %v170
    %1138 = vmatprep.subr.mxu0 %v62
    %1139 = vmatpush1.msra.mxu0 %v61
    %1140 = vmatprep.subr.mxu0 %v66
    %1141 = vmatpush1.msra.mxu0 %v65
    %1142 = vmatprep.subr.mxu0 %v70
    %1143 = vmatpush1.msra.mxu0 %v69
    %1144 = vmatprep.subr.mxu0 %v74
    %1145 = vmatpush1.msra.mxu0 %v73
    %1146 = vmatprep.subr.mxu0 %v78
    %1147 = vmatpush1.msra.mxu0 %v77
    %1148 = vmatprep.subr.mxu0 %v82
    %1149 = vmatpush1.msra.mxu0 %v81
    %1150 = vmatprep.subr.mxu0 %v86
    %1151 = vmatpush1.msra.mxu0 %v85
    %1152 = vmatprep.subr.mxu0 %v90
    %1153 = vmatpush1.msra.mxu0 %v89
    %1154 = vmatprep.subr.mxu0 %v94
    %1155 = vmatpush1.msra.mxu0 %v93
    %1156 = vmatprep.subr.mxu0 %v98
    %1157 = vmatpush1.msra.mxu0 %v97
    %1158 = vmatprep.subr.mxu0 %v102
    %1159 = vmatpush1.msra.mxu0 %v101
    %1160 = vmatprep.subr.mxu0 %v106
    %1161 = vmatpush1.msra.mxu0 %v105
    %1162 = vmatprep.subr.mxu0 %v110
    %1163 = vmatpush1.msra.mxu0 %v109
    %1164 = vmatprep.subr.mxu0 %v114
    %1165 = vmatpush1.msra.mxu0 %v113
    %1166 = vmatprep.subr.mxu0 %v118
    %1167 = vmatpush1.msra.mxu0 %v117
    %1168 = vmatprep.subr.mxu0 %v122
    %1169 = vmatpush1.msra.mxu0 %v121
    %1170 = vmatprep.subr.mxu0 0.0
    %1171 = vmatpush1.msra.mxu0 0.0
    %1172 = vmatprep.subr.mxu0 0.0
    %1173 = vmatpush1.msra.mxu0 0.0
    %1174 = vmatprep.subr.mxu0 0.0
    %1175 = vmatpush1.msra.mxu0 0.0
    %1176 = vmatprep.subr.mxu0 0.0
    %1177 = vmatpush1.msra.mxu0 0.0
    %1178 = vmatprep.subr.mxu0 0.0
    %1179 = vmatpush1.msra.mxu0 0.0
    %1180 = vmatprep.subr.mxu0 0.0
    %1181 = vmatpush1.msra.mxu0 0.0
    %1182 = vmatprep.subr.mxu0 0.0
    %1183 = vmatpush1.msra.mxu0 0.0
    %1184 = vmatprep.subr.mxu0 0.0
    %1185 = vmatpush1.msra.mxu0 0.0
    %1186 = vmatprep.subr.mxu0 0.0
    %1187 = vmatpush1.msra.mxu0 0.0
    %1188 = vmatprep.subr.mxu0 0.0
    %1189 = vmatpush1.msra.mxu0 0.0
    %1190 = vmatprep.subr.mxu0 0.0
    %1191 = vmatpush1.msra.mxu0 0.0
    %1192 = vmatprep.subr.mxu0 0.0
    %1193 = vmatpush1.msra.mxu0 0.0
    %1194 = vmatprep.subr.mxu0 0.0
    %1195 = vmatpush1.msra.mxu0 0.0
    %1196 = vmatprep.subr.mxu0 0.0
    %1197 = vmatpush1.msra.mxu0 0.0
    %1198 = vmatprep.subr.mxu0 0.0
    %1199 = vmatpush1.msra.mxu0 0.0
    %1200 = vmatprep.subr.mxu0 0.0
    %1201 = vmatpush1.msra.mxu0 0.0
    %1202 = vmatprep.mubr.f32.mxu0 0.0
    %1203 = vmatmul.mubr.f32.gmra.mrb[0].mxu0 %v1133
    %v1204 = vpop.f32.mrb[0].mxu0
    %v1205 = vadd.f32 %v1134, %v1204
    %v1206 = vpop.f32.mrb[0].mxu0
    %v1207 = vadd.f32 %v1135, %v1206
    %1208 = vdwg.mxu0
    %1209 = vmatprep.subr.mxu0 %v64
    %1210 = vmatpush1.msra.mxu0 %v63
    %1211 = vmatprep.subr.mxu0 %v68
    %1212 = vmatpush1.msra.mxu0 %v67
    %1213 = vmatprep.subr.mxu0 %v72
    %1214 = vmatpush1.msra.mxu0 %v71
    %1215 = vmatprep.subr.mxu0 %v76
    %1216 = vmatpush1.msra.mxu0 %v75
    %1217 = vmatprep.subr.mxu0 %v80
    %1218 = vmatpush1.msra.mxu0 %v79
    %1219 = vmatprep.subr.mxu0 %v84
    %1220 = vmatpush1.msra.mxu0 %v83
    %1221 = vmatprep.subr.mxu0 %v88
    %1222 = vmatpush1.msra.mxu0 %v87
    %1223 = vmatprep.subr.mxu0 %v92
    %1224 = vmatpush1.msra.mxu0 %v91
    %1225 = vmatprep.subr.mxu0 %v96
    %1226 = vmatpush1.msra.mxu0 %v95
    %1227 = vmatprep.subr.mxu0 %v100
    %1228 = vmatpush1.msra.mxu0 %v99
    %1229 = vmatprep.subr.mxu0 %v104
    %1230 = vmatpush1.msra.mxu0 %v103
    %1231 = vmatprep.subr.mxu0 %v108
    %1232 = vmatpush1.msra.mxu0 %v107
    %1233 = vmatprep.subr.mxu0 %v112
    %1234 = vmatpush1.msra.mxu0 %v111
    %1235 = vmatprep.subr.mxu0 %v116
    %1236 = vmatpush1.msra.mxu0 %v115
    %1237 = vmatprep.subr.mxu0 %v120
    %1238 = vmatpush1.msra.mxu0 %v119
    %1239 = vmatprep.subr.mxu0 %v124
    %1240 = vmatpush1.msra.mxu0 %v123
    %1241 = vmatprep.subr.mxu0 0.0
    %1242 = vmatpush1.msra.mxu0 0.0
    %1243 = vmatprep.subr.mxu0 0.0
    %1244 = vmatpush1.msra.mxu0 0.0
    %1245 = vmatprep.subr.mxu0 0.0
    %1246 = vmatpush1.msra.mxu0 0.0
    %1247 = vmatprep.subr.mxu0 0.0
    %1248 = vmatpush1.msra.mxu0 0.0
    %1249 = vmatprep.subr.mxu0 0.0
    %1250 = vmatpush1.msra.mxu0 0.0
    %1251 = vmatprep.subr.mxu0 0.0
    %1252 = vmatpush1.msra.mxu0 0.0
    %1253 = vmatprep.subr.mxu0 0.0
    %1254 = vmatpush1.msra.mxu0 0.0
    %1255 = vmatprep.subr.mxu0 0.0
    %1256 = vmatpush1.msra.mxu0 0.0
    %1257 = vmatprep.subr.mxu0 0.0
    %1258 = vmatpush1.msra.mxu0 0.0
    %1259 = vmatprep.subr.mxu0 0.0
    %1260 = vmatpush1.msra.mxu0 0.0
    %1261 = vmatprep.subr.mxu0 0.0
    %1262 = vmatpush1.msra.mxu0 0.0
    %1263 = vmatprep.subr.mxu0 0.0
    %1264 = vmatpush1.msra.mxu0 0.0
    %1265 = vmatprep.subr.mxu0 0.0
    %1266 = vmatpush1.msra.mxu0 0.0
    %1267 = vmatprep.subr.mxu0 0.0
    %1268 = vmatpush1.msra.mxu0 0.0
    %1269 = vmatprep.subr.mxu0 0.0
    %1270 = vmatpush1.msra.mxu0 0.0
    %1271 = vmatprep.subr.mxu0 0.0
    %1272 = vmatpush1.msra.mxu0 0.0
    %1273 = vmatprep.mubr.f32.mxu0 0.0
    %1274 = vmatmul.mubr.f32.gmra.mrb[0].mxu0 %v1133
    %v1275 = vpop.f32.mrb[0].mxu0
    %v1276 = vadd.f32 %v1136, %v1275
    %v1277 = vpop.f32.mrb[0].mxu0
    %v1278 = vadd.f32 %v1137, %v1277
    %1279 = vdwg.mxu0
    %v1280 = vmul.f32 %v574, %v329
    %v1281 = vmul.f32 %v574, %v333
    %v1282 = vmul.f32 %v574, %v337
    %v1283 = vmul.f32 %v574, %v341
    %v1284 = vadd.f32 %v1205, %v1280
    %v1285 = vadd.f32 %v1207, %v1281
    %v1286 = vadd.f32 %v1276, %v1282
    %v1287 = vadd.f32 %v1278, %v1283
    %v1288 = vadd.f32 %v1284, %v132
    %v1289 = vadd.f32 %v1285, %v136
    %v1290 = vadd.f32 %v1286, %v140
    %v1291 = vadd.f32 %v1287, %v144
    %v1292 = vxor.u32 %v1288, 2147483648
    %v1293 = vmul.f32 %v1292, 1.442695
    %v1294 = vpow.pop %v1293
    %v1295 = vadd.f32 %v1294, 1.0
    %v1296 = vrcp.pop %v1295
    %v1297 = vmul.f32 1.0, %v1296
    %v1298 = vxor.u32 %v1289, 2147483648
    %v1299 = vmul.f32 %v1298, 1.442695
    %v1300 = vpow.pop %v1299
    %v1301 = vadd.f32 %v1300, 1.0
    %v1302 = vrcp.pop %v1301
    %v1303 = vmul.f32 1.0, %v1302
    %v1304 = vtanh.pop %v1290
    %v1305 = vxor.u32 %v1291, 2147483648
    %v1306 = vmul.f32 %v1305, 1.442695
    %v1307 = vpow.pop %v1306
    %v1308 = vadd.f32 %v1307, 1.0
    %v1309 = vrcp.pop %v1308
    %v1310 = vmul.f32 1.0, %v1309
    %v1311 = vmul.f32 %v1303, %v1131
    %v1312 = vmul.f32 %v1297, %v1304
    %v1313 = vadd.f32 %v1311, %v1312
    %v1314 = vtanh.pop %v1313
    %v1315 = vmul.f32 %v1310, %v1314
    %v1316 = vmul.f32 %v534, %v158
    %v1317 = vmul.f32 %v534, %v162
    %v1318 = vmul.f32 %v534, %v166
    %v1319 = vmul.f32 %v534, %v170
    %1320 = vmatprep.subr.mxu0 %v62
    %1321 = vmatpush1.msra.mxu0 %v61
    %1322 = vmatprep.subr.mxu0 %v66
    %1323 = vmatpush1.msra.mxu0 %v65
    %1324 = vmatprep.subr.mxu0 %v70
    %1325 = vmatpush1.msra.mxu0 %v69
    %1326 = vmatprep.subr.mxu0 %v74
    %1327 = vmatpush1.msra.mxu0 %v73
    %1328 = vmatprep.subr.mxu0 %v78
    %1329 = vmatpush1.msra.mxu0 %v77
    %1330 = vmatprep.subr.mxu0 %v82
    %1331 = vmatpush1.msra.mxu0 %v81
    %1332 = vmatprep.subr.mxu0 %v86
    %1333 = vmatpush1.msra.mxu0 %v85
    %1334 = vmatprep.subr.mxu0 %v90
    %1335 = vmatpush1.msra.mxu0 %v89
    %1336 = vmatprep.subr.mxu0 %v94
    %1337 = vmatpush1.msra.mxu0 %v93
    %1338 = vmatprep.subr.mxu0 %v98
    %1339 = vmatpush1.msra.mxu0 %v97
    %1340 = vmatprep.subr.mxu0 %v102
    %1341 = vmatpush1.msra.mxu0 %v101
    %1342 = vmatprep.subr.mxu0 %v106
    %1343 = vmatpush1.msra.mxu0 %v105
    %1344 = vmatprep.subr.mxu0 %v110
    %1345 = vmatpush1.msra.mxu0 %v109
    %1346 = vmatprep.subr.mxu0 %v114
    %1347 = vmatpush1.msra.mxu0 %v113
    %1348 = vmatprep.subr.mxu0 %v118
    %1349 = vmatpush1.msra.mxu0 %v117
    %1350 = vmatprep.subr.mxu0 %v122
    %1351 = vmatpush1.msra.mxu0 %v121
    %1352 = vmatprep.subr.mxu0 0.0
    %1353 = vmatpush1.msra.mxu0 0.0
    %1354 = vmatprep.subr.mxu0 0.0
    %1355 = vmatpush1.msra.mxu0 0.0
    %1356 = vmatprep.subr.mxu0 0.0
    %1357 = vmatpush1.msra.mxu0 0.0
    %1358 = vmatprep.subr.mxu0 0.0
    %1359 = vmatpush1.msra.mxu0 0.0
    %1360 = vmatprep.subr.mxu0 0.0
    %1361 = vmatpush1.msra.mxu0 0.0
    %1362 = vmatprep.subr.mxu0 0.0
    %1363 = vmatpush1.msra.mxu0 0.0
    %1364 = vmatprep.subr.mxu0 0.0
    %1365 = vmatpush1.msra.mxu0 0.0
    %1366 = vmatprep.subr.mxu0 0.0
    %1367 = vmatpush1.msra.mxu0 0.0
    %1368 = vmatprep.subr.mxu0 0.0
    %1369 = vmatpush1.msra.mxu0 0.0
    %1370 = vmatprep.subr.mxu0 0.0
    %1371 = vmatpush1.msra.mxu0 0.0
    %1372 = vmatprep.subr.mxu0 0.0
    %1373 = vmatpush1.msra.mxu0 0.0
    %1374 = vmatprep.subr.mxu0 0.0
    %1375 = vmatpush1.msra.mxu0 0.0
    %1376 = vmatprep.subr.mxu0 0.0
    %1377 = vmatpush1.msra.mxu0 0.0
    %1378 = vmatprep.subr.mxu0 0.0
    %1379 = vmatpush1.msra.mxu0 0.0
    %1380 = vmatprep.subr.mxu0 0.0
    %1381 = vmatpush1.msra.mxu0 0.0
    %1382 = vmatprep.subr.mxu0 0.0
    %1383 = vmatpush1.msra.mxu0 0.0
    %1384 = vmatprep.mubr.f32.mxu0 0.0
    %1385 = vmatmul.mubr.f32.gmra.mrb[0].mxu0 %v1315
    %v1386 = vpop.f32.mrb[0].mxu0
    %v1387 = vadd.f32 %v1316, %v1386
    %v1388 = vpop.f32.mrb[0].mxu0
    %v1389 = vadd.f32 %v1317, %v1388
    %1390 = vdwg.mxu0
    %1391 = vmatprep.subr.mxu0 %v64
    %1392 = vmatpush1.msra.mxu0 %v63
    %1393 = vmatprep.subr.mxu0 %v68
    %1394 = vmatpush1.msra.mxu0 %v67
    %1395 = vmatprep.subr.mxu0 %v72
    %1396 = vmatpush1.msra.mxu0 %v71
    %1397 = vmatprep.subr.mxu0 %v76
    %1398 = vmatpush1.msra.mxu0 %v75
    %1399 = vmatprep.subr.mxu0 %v80
    %1400 = vmatpush1.msra.mxu0 %v79
    %1401 = vmatprep.subr.mxu0 %v84
    %1402 = vmatpush1.msra.mxu0 %v83
    %1403 = vmatprep.subr.mxu0 %v88
    %1404 = vmatpush1.msra.mxu0 %v87
    %1405 = vmatprep.subr.mxu0 %v92
    %1406 = vmatpush1.msra.mxu0 %v91
    %1407 = vmatprep.subr.mxu0 %v96
    %1408 = vmatpush1.msra.mxu0 %v95
    %1409 = vmatprep.subr.mxu0 %v100
    %1410 = vmatpush1.msra.mxu0 %v99
    %1411 = vmatprep.subr.mxu0 %v104
    %1412 = vmatpush1.msra.mxu0 %v103
    %1413 = vmatprep.subr.mxu0 %v108
    %1414 = vmatpush1.msra.mxu0 %v107
    %1415 = vmatprep.subr.mxu0 %v112
    %1416 = vmatpush1.msra.mxu0 %v111
    %1417 = vmatprep.subr.mxu0 %v116
    %1418 = vmatpush1.msra.mxu0 %v115
    %1419 = vmatprep.subr.mxu0 %v120
    %1420 = vmatpush1.msra.mxu0 %v119
    %1421 = vmatprep.subr.mxu0 %v124
    %1422 = vmatpush1.msra.mxu0 %v123
    %1423 = vmatprep.subr.mxu0 0.0
    %1424 = vmatpush1.msra.mxu0 0.0
    %1425 = vmatprep.subr.mxu0 0.0
    %1426 = vmatpush1.msra.mxu0 0.0
    %1427 = vmatprep.subr.mxu0 0.0
    %1428 = vmatpush1.msra.mxu0 0.0
    %1429 = vmatprep.subr.mxu0 0.0
    %1430 = vmatpush1.msra.mxu0 0.0
    %1431 = vmatprep.subr.mxu0 0.0
    %1432 = vmatpush1.msra.mxu0 0.0
    %1433 = vmatprep.subr.mxu0 0.0
    %1434 = vmatpush1.msra.mxu0 0.0
    %1435 = vmatprep.subr.mxu0 0.0
    %1436 = vmatpush1.msra.mxu0 0.0
    %1437 = vmatprep.subr.mxu0 0.0
    %1438 = vmatpush1.msra.mxu0 0.0
    %1439 = vmatprep.subr.mxu0 0.0
    %1440 = vmatpush1.msra.mxu0 0.0
    %1441 = vmatprep.subr.mxu0 0.0
    %1442 = vmatpush1.msra.mxu0 0.0
    %1443 = vmatprep.subr.mxu0 0.0
    %1444 = vmatpush1.msra.mxu0 0.0
    %1445 = vmatprep.subr.mxu0 0.0
    %1446 = vmatpush1.msra.mxu0 0.0
    %1447 = vmatprep.subr.mxu0 0.0
    %1448 = vmatpush1.msra.mxu0 0.0
    %1449 = vmatprep.subr.mxu0 0.0
    %1450 = vmatpush1.msra.mxu0 0.0
    %1451 = vmatprep.subr.mxu0 0.0
    %1452 = vmatpush1.msra.mxu0 0.0
    %1453 = vmatprep.subr.mxu0 0.0
    %1454 = vmatpush1.msra.mxu0 0.0
    %1455 = vmatprep.mubr.f32.mxu0 0.0
    %1456 = vmatmul.mubr.f32.gmra.mrb[0].mxu0 %v1315
    %v1457 = vpop.f32.mrb[0].mxu0
    %v1458 = vadd.f32 %v1318, %v1457
    %v1459 = vpop.f32.mrb[0].mxu0
    %v1460 = vadd.f32 %v1319, %v1459
    %1461 = vdwg.mxu0
    %v1462 = vmul.f32 %v384, %v329
    %v1463 = vmul.f32 %v384, %v333
    %v1464 = vmul.f32 %v384, %v337
    %v1465 = vmul.f32 %v384, %v341
    %v1466 = vadd.f32 %v1387, %v1462
    %v1467 = vadd.f32 %v1389, %v1463
    %v1468 = vadd.f32 %v1458, %v1464
    %v1469 = vadd.f32 %v1460, %v1465
    %v1470 = vadd.f32 %v1466, %v132
    %v1471 = vadd.f32 %v1467, %v136
    %v1472 = vadd.f32 %v1468, %v140
    %v1473 = vadd.f32 %v1469, %v144
    %v1474 = vxor.u32 %v1470, 2147483648
    %v1475 = vmul.f32 %v1474, 1.442695
    %v1476 = vpow.pop %v1475
    %v1477 = vadd.f32 %v1476, 1.0
    %v1478 = vrcp.pop %v1477
    %v1479 = vmul.f32 1.0, %v1478
    %v1480 = vxor.u32 %v1471, 2147483648
    %v1481 = vmul.f32 %v1480, 1.442695
    %v1482 = vpow.pop %v1481
    %v1483 = vadd.f32 %v1482, 1.0
    %v1484 = vrcp.pop %v1483
    %v1485 = vmul.f32 1.0, %v1484
    %v1486 = vtanh.pop %v1472
    %v1487 = vxor.u32 %v1473, 2147483648
    %v1488 = vmul.f32 %v1487, 1.442695
    %v1489 = vpow.pop %v1488
    %v1490 = vadd.f32 %v1489, 1.0
    %v1491 = vrcp.pop %v1490
    %v1492 = vmul.f32 1.0, %v1491
    %v1493 = vmul.f32 %v1485, %v1313
    %v1494 = vmul.f32 %v1479, %v1486
    %v1495 = vadd.f32 %v1493, %v1494
    %v1496 = vtanh.pop %v1495
    %v1497 = vmul.f32 %v1492, %v1496
    %v1498 = vmul.f32 %v323, %v158
    %v1499 = vmul.f32 %v323, %v162
    %v1500 = vmul.f32 %v323, %v166
    %v1501 = vmul.f32 %v323, %v170
    %1502 = vmatprep.subr.mxu0 %v62
    %1503 = vmatpush1.msra.mxu0 %v61
    %1504 = vmatprep.subr.mxu0 %v66
    %1505 = vmatpush1.msra.mxu0 %v65
    %1506 = vmatprep.subr.mxu0 %v70
    %1507 = vmatpush1.msra.mxu0 %v69
    %1508 = vmatprep.subr.mxu0 %v74
    %1509 = vmatpush1.msra.mxu0 %v73
    %1510 = vmatprep.subr.mxu0 %v78
    %1511 = vmatpush1.msra.mxu0 %v77
    %1512 = vmatprep.subr.mxu0 %v82
    %1513 = vmatpush1.msra.mxu0 %v81
    %1514 = vmatprep.subr.mxu0 %v86
    %1515 = vmatpush1.msra.mxu0 %v85
    %1516 = vmatprep.subr.mxu0 %v90
    %1517 = vmatpush1.msra.mxu0 %v89
    %1518 = vmatprep.subr.mxu0 %v94
    %1519 = vmatpush1.msra.mxu0 %v93
    %1520 = vmatprep.subr.mxu0 %v98
    %1521 = vmatpush1.msra.mxu0 %v97
    %1522 = vmatprep.subr.mxu0 %v102
    %1523 = vmatpush1.msra.mxu0 %v101
    %1524 = vmatprep.subr.mxu0 %v106
    %1525 = vmatpush1.msra.mxu0 %v105
    %1526 = vmatprep.subr.mxu0 %v110
    %1527 = vmatpush1.msra.mxu0 %v109
    %1528 = vmatprep.subr.mxu0 %v114
    %1529 = vmatpush1.msra.mxu0 %v113
    %1530 = vmatprep.subr.mxu0 %v118
    %1531 = vmatpush1.msra.mxu0 %v117
    %1532 = vmatprep.subr.mxu0 %v122
    %1533 = vmatpush1.msra.mxu0 %v121
    %1534 = vmatprep.subr.mxu0 0.0
    %1535 = vmatpush1.msra.mxu0 0.0
    %1536 = vmatprep.subr.mxu0 0.0
    %1537 = vmatpush1.msra.mxu0 0.0
    %1538 = vmatprep.subr.mxu0 0.0
    %1539 = vmatpush1.msra.mxu0 0.0
    %1540 = vmatprep.subr.mxu0 0.0
    %1541 = vmatpush1.msra.mxu0 0.0
    %1542 = vmatprep.subr.mxu0 0.0
    %1543 = vmatpush1.msra.mxu0 0.0
    %1544 = vmatprep.subr.mxu0 0.0
    %1545 = vmatpush1.msra.mxu0 0.0
    %1546 = vmatprep.subr.mxu0 0.0
    %1547 = vmatpush1.msra.mxu0 0.0
    %1548 = vmatprep.subr.mxu0 0.0
    %1549 = vmatpush1.msra.mxu0 0.0
    %1550 = vmatprep.subr.mxu0 0.0
    %1551 = vmatpush1.msra.mxu0 0.0
    %1552 = vmatprep.subr.mxu0 0.0
    %1553 = vmatpush1.msra.mxu0 0.0
    %1554 = vmatprep.subr.mxu0 0.0
    %1555 = vmatpush1.msra.mxu0 0.0
    %1556 = vmatprep.subr.mxu0 0.0
    %1557 = vmatpush1.msra.mxu0 0.0
    %1558 = vmatprep.subr.mxu0 0.0
    %1559 = vmatpush1.msra.mxu0 0.0
    %1560 = vmatprep.subr.mxu0 0.0
    %1561 = vmatpush1.msra.mxu0 0.0
    %1562 = vmatprep.subr.mxu0 0.0
    %1563 = vmatpush1.msra.mxu0 0.0
    %1564 = vmatprep.subr.mxu0 0.0
    %1565 = vmatpush1.msra.mxu0 0.0
    %1566 = vmatprep.mubr.f32.mxu0 0.0
    %1567 = vmatmul.mubr.f32.gmra.mrb[0].mxu0 %v1497
    %v1568 = vpop.f32.mrb[0].mxu0
    %v1569 = vadd.f32 %v1498, %v1568
    %v1570 = vpop.f32.mrb[0].mxu0
    %v1571 = vadd.f32 %v1499, %v1570
    %1572 = vdwg.mxu0
    %1573 = vmatprep.subr.mxu0 %v64
    %1574 = vmatpush1.msra.mxu0 %v63
    %1575 = vmatprep.subr.mxu0 %v68
    %1576 = vmatpush1.msra.mxu0 %v67
    %1577 = vmatprep.subr.mxu0 %v72
    %1578 = vmatpush1.msra.mxu0 %v71
    %1579 = vmatprep.subr.mxu0 %v76
    %1580 = vmatpush1.msra.mxu0 %v75
    %1581 = vmatprep.subr.mxu0 %v80
    %1582 = vmatpush1.msra.mxu0 %v79
    %1583 = vmatprep.subr.mxu0 %v84
    %1584 = vmatpush1.msra.mxu0 %v83
    %1585 = vmatprep.subr.mxu0 %v88
    %1586 = vmatpush1.msra.mxu0 %v87
    %1587 = vmatprep.subr.mxu0 %v92
    %1588 = vmatpush1.msra.mxu0 %v91
    %1589 = vmatprep.subr.mxu0 %v96
    %1590 = vmatpush1.msra.mxu0 %v95
    %1591 = vmatprep.subr.mxu0 %v100
    %1592 = vmatpush1.msra.mxu0 %v99
    %1593 = vmatprep.subr.mxu0 %v104
    %1594 = vmatpush1.msra.mxu0 %v103
    %1595 = vmatprep.subr.mxu0 %v108
    %1596 = vmatpush1.msra.mxu0 %v107
    %1597 = vmatprep.subr.mxu0 %v112
    %1598 = vmatpush1.msra.mxu0 %v111
    %1599 = vmatprep.subr.mxu0 %v116
    %1600 = vmatpush1.msra.mxu0 %v115
    %1601 = vmatprep.subr.mxu0 %v120
    %1602 = vmatpush1.msra.mxu0 %v119
    %1603 = vmatprep.subr.mxu0 %v124
    %1604 = vmatpush1.msra.mxu0 %v123
    %1605 = vmatprep.subr.mxu0 0.0
    %1606 = vmatpush1.msra.mxu0 0.0
    %1607 = vmatprep.subr.mxu0 0.0
    %1608 = vmatpush1.msra.mxu0 0.0
    %1609 = vmatprep.subr.mxu0 0.0
    %1610 = vmatpush1.msra.mxu0 0.0
    %1611 = vmatprep.subr.mxu0 0.0
    %1612 = vmatpush1.msra.mxu0 0.0
    %1613 = vmatprep.subr.mxu0 0.0
    %1614 = vmatpush1.msra.mxu0 0.0
    %1615 = vmatprep.subr.mxu0 0.0
    %1616 = vmatpush1.msra.mxu0 0.0
    %1617 = vmatprep.subr.mxu0 0.0
    %1618 = vmatpush1.msra.mxu0 0.0
    %1619 = vmatprep.subr.mxu0 0.0
    %1620 = vmatpush1.msra.mxu0 0.0
    %1621 = vmatprep.subr.mxu0 0.0
    %1622 = vmatpush1.msra.mxu0 0.0
    %1623 = vmatprep.subr.mxu0 0.0
    %1624 = vmatpush1.msra.mxu0 0.0
    %1625 = vmatprep.subr.mxu0 0.0
    %1626 = vmatpush1.msra.mxu0 0.0
    %1627 = vmatprep.subr.mxu0 0.0
    %1628 = vmatpush1.msra.mxu0 0.0
    %1629 = vmatprep.subr.mxu0 0.0
    %1630 = vmatpush1.msra.mxu0 0.0
    %1631 = vmatprep.subr.mxu0 0.0
    %1632 = vmatpush1.msra.mxu0 0.0
    %1633 = vmatprep.subr.mxu0 0.0
    %1634 = vmatpush1.msra.mxu0 0.0
    %1635 = vmatprep.subr.mxu0 0.0
    %1636 = vmatpush1.msra.mxu0 0.0
    %1637 = vmatprep.mubr.f32.mxu0 0.0
    %1638 = vmatmul.mubr.f32.gmra.mrb[0].mxu0 %v1497
    %v1639 = vpop.f32.mrb[0].mxu0
    %v1640 = vadd.f32 %v1500, %v1639
    %v1641 = vpop.f32.mrb[0].mxu0
    %v1642 = vadd.f32 %v1501, %v1641
    %1643 = vdwg.mxu0
    %v1644 = vmul.f32 %v152, %v329
    %v1645 = vmul.f32 %v152, %v333
    %v1646 = vmul.f32 %v152, %v337
    %v1647 = vmul.f32 %v152, %v341
    %v1648 = vadd.f32 %v1569, %v1644
    %v1649 = vadd.f32 %v1571, %v1645
    %v1650 = vadd.f32 %v1640, %v1646
    %v1651 = vadd.f32 %v1642, %v1647
    %v1652 = vadd.f32 %v1648, %v132
    %v1653 = vadd.f32 %v1649, %v136
    %v1654 = vadd.f32 %v1650, %v140
    %v1655 = vadd.f32 %v1651, %v144
    %v1656 = vxor.u32 %v1652, 2147483648
    %v1657 = vmul.f32 %v1656, 1.442695
    %v1658 = vpow.pop %v1657
    %v1659 = vadd.f32 %v1658, 1.0
    %v1660 = vrcp.pop %v1659
    %v1661 = vmul.f32 1.0, %v1660
    %v1662 = vxor.u32 %v1653, 2147483648
    %v1663 = vmul.f32 %v1662, 1.442695
    %v1664 = vpow.pop %v1663
    %v1665 = vadd.f32 %v1664, 1.0
    %v1666 = vrcp.pop %v1665
    %v1667 = vmul.f32 1.0, %v1666
    %v1668 = vtanh.pop %v1654
    %v1669 = vxor.u32 %v1655, 2147483648
    %v1670 = vmul.f32 %v1669, 1.442695
    %v1671 = vpow.pop %v1670
    %v1672 = vadd.f32 %v1671, 1.0
    %v1673 = vrcp.pop %v1672
    %v1674 = vmul.f32 1.0, %v1673
    %v1675 = vmul.f32 %v1667, %v1495
    %v1676 = vmul.f32 %v1661, %v1668
    %v1677 = vadd.f32 %v1675, %v1676
    %v1678 = vtanh.pop %v1677
    %v1679 = vmul.f32 %v1674, %v1678
    %v1681 = vlaneseq
    %v1682 = vshrl.u32 %v1681, 7
    %v1683 = vsub.s32 0, %v1682
    %v1684 = vrot.slane %v125, %v1683
    %v1686 = vmul.f32 %v381, %v1684
    %v1687 = vmul.f32 %v571, %v1684
    %v1688 = vmul.f32 %v761, %v1684
    %v1689 = vmul.f32 %v951, %v1684
    %v1690 = vmul.f32 %v1133, %v1684
    %v1691 = vmul.f32 %v1315, %v1684
    %v1692 = vmul.f32 %v1497, %v1684
    %v1693 = vmul.f32 %v1679, %v1684
    %v1695 = vlaneseq
    %v1696 = vshrl.u32 %v1695, 7
    %v1697 = vsub.s32 0, %v1696
    %v1698 = vrot.slane %v126, %v1697
    %v1700 = vmul.f32 %v1679, %v1698
    %v1701 = vmul.f32 %v1497, %v1698
    %v1702 = vmul.f32 %v1315, %v1698
    %v1703 = vmul.f32 %v1133, %v1698
    %v1704 = vmul.f32 %v951, %v1698
    %v1705 = vmul.f32 %v761, %v1698
    %v1706 = vmul.f32 %v571, %v1698
    %v1707 = vmul.f32 %v381, %v1698
    %v1708 = vadd.f32 %v1686, %v1700
    %v1709 = vadd.f32 %v1687, %v1701
    %v1710 = vadd.f32 %v1688, %v1702
    %v1711 = vadd.f32 %v1689, %v1703
    %v1712 = vadd.f32 %v1690, %v1704
    %v1713 = vadd.f32 %v1691, %v1705
    %v1714 = vadd.f32 %v1692, %v1706
    %v1715 = vadd.f32 %v1693, %v1707
    %1716 = vadd.xlane.f32.xlu0 %v1708
    %v1717 = vpop.xlane.xlu0 %1716
    %1718 = vadd.xlane.f32.xlu0 %v1709
    %v1719 = vpop.xlane.xlu0 %1718
    %1720 = vadd.xlane.f32.xlu0 %v1710
    %v1721 = vpop.xlane.xlu0 %1720
    %1722 = vadd.xlane.f32.xlu0 %v1711
    %v1723 = vpop.xlane.xlu0 %1722
    %1724 = vadd.xlane.f32.xlu0 %v1712
    %v1725 = vpop.xlane.xlu0 %1724
    %1726 = vadd.xlane.f32.xlu0 %v1713
    %v1727 = vpop.xlane.xlu0 %1726
    %1728 = vadd.xlane.f32.xlu0 %v1714
    %v1729 = vpop.xlane.xlu0 %1728
    %1730 = vadd.xlane.f32.xlu0 %v1715
    %v1731 = vpop.xlane.xlu0 %1730
    %v1732 = vld [vmem:[#allocation2] sm:$0x1]
    %v1734 = vlaneseq
    %v1735 = vshrl.u32 %v1734, 7
    %v1736 = vsub.s32 0, %v1735
    %v1737 = vrot.slane %v1732, %v1736
    %1738 = vset.pattern.permute.xlu0 0
    %1739 = vperm.xlu0 %1738, %v1737
    %v1740 = vpop.permute.xlu0 %1739
    %v1742 = vadd.f32 %v1717, %v1740
    %v1743 = vadd.f32 %v1719, %v1740
    %v1744 = vadd.f32 %v1721, %v1740
    %v1745 = vadd.f32 %v1723, %v1740
    %v1746 = vadd.f32 %v1725, %v1740
    %v1747 = vadd.f32 %v1727, %v1740
    %v1748 = vadd.f32 %v1729, %v1740
    %v1749 = vadd.f32 %v1731, %v1740
    %v1758 = vlaneseq
    %v1759 = vand.u32 %v1758, 127
    %v1760 = vlaneseq
    %v1761 = vshrl.u32 %v1760, 7
    %v1762 = vsub.s32 %v1759, %v1761
    %v1763 = vrot.slane %v1742, %v1762
    %v1764 = vlaneseq
    %v1765 = vshrl.u32 %v1764, 7
    %v1766 = vsub.s32 %v1759, %v1765
    %v1767 = vrot.slane %v1743, %v1766
    %v1768 = vlaneseq
    %v1769 = vshrl.u32 %v1768, 7
    %v1770 = vsub.s32 %v1759, %v1769
    %v1771 = vrot.slane %v1744, %v1770
    %v1772 = vlaneseq
    %v1773 = vshrl.u32 %v1772, 7
    %v1774 = vsub.s32 %v1759, %v1773
    %v1775 = vrot.slane %v1745, %v1774
    %v1776 = vlaneseq
    %v1777 = vshrl.u32 %v1776, 7
    %v1778 = vsub.s32 %v1759, %v1777
    %v1779 = vrot.slane %v1746, %v1778
    %v1780 = vlaneseq
    %v1781 = vshrl.u32 %v1780, 7
    %v1782 = vsub.s32 %v1759, %v1781
    %v1783 = vrot.slane %v1747, %v1782
    %v1784 = vlaneseq
    %v1785 = vshrl.u32 %v1784, 7
    %v1786 = vsub.s32 %v1759, %v1785
    %v1787 = vrot.slane %v1748, %v1786
    %v1788 = vlaneseq
    %v1789 = vshrl.u32 %v1788, 7
    %v1790 = vsub.s32 %v1759, %v1789
    %v1791 = vrot.slane %v1749, %v1790
    %vm1792 = vcmask 1041409
    %v1793 = vsel %vm1792, %v1767, %v1763
    %vm1794 = vcmask 1042434
    %v1795 = vsel %vm1794, %v1771, %v1793
    %vm1796 = vcmask 1043459
    %v1797 = vsel %vm1796, %v1775, %v1795
    %vm1798 = vcmask 1044484
    %v1799 = vsel %vm1798, %v1779, %v1797
    %vm1800 = vcmask 1045509
    %v1801 = vsel %vm1800, %v1783, %v1799
    %vm1802 = vcmask 1046534
    %v1803 = vsel %vm1802, %v1787, %v1801
    %vm1804 = vcmask 1047559
    %v1805 = vsel %vm1804, %v1791, %v1803
    %vm1807 = vcmask 64512
    %1808 = vst.msk [vmem:[#allocation8] sm:$0xff] %vm1807, %v1805
    // Predicated region
    $region42: #{tpu_custom_call.1} parent=1 // pred_check
      _
    $region43: #{tpu_custom_call.1} parent=1 // pred_check_branch
      %1810 = sbr.rel (0) target = $region45
    $region44: #{tpu_custom_call.1} parent=1 // pred_region
      %s1812 = ssub.s32 128, 128
      %1813 = vsyncadd [#allocation5], %s1812
      %s1815 = sshll.u32 [#allocation8], 4
      %s1816 = int_to_ptr.vmem [resolvable:$true] %s1815
      %1818 = dma.vmem_to_hbm [thread:$0]  %s1816, 128, %s8, [#allocation5]
    $region45: #{tpu_custom_call.1} parent=1 // pred_fallthru
      _
    // Predicated region
    $region46: #{tpu_custom_call.1} parent=1 // pred_check
      _
    $region47: #{tpu_custom_call.1} parent=1 // pred_check_branch
      %1820 = sbr.rel (0) target = $region49
    $region48: #{tpu_custom_call.1} parent=1 // pred_region
      %1821 = dma.done [#allocation5], 128
    $region49: #{tpu_custom_call.1} parent=1 // pred_fallthru
      _
    %1822 = vsyncpa [#allocation4], 1
    %1823 = vsyncpa [#allocation7], 1
    %1824 = vsyncpa [#allocation5], 1

</llo_original>
